<compile_context>
chip_gen: v6e
topology: v6e:2x2x1
jax: 0.10.0
libtpu: 0.0.40
codegen_flags: <defaults>
</compile_context>

<pallas_src>
import math

import jax
import jax.numpy as jnp
from jax.experimental import pallas as pl
from jax.experimental.pallas import tpu as pltpu


BATCH_TILE = 1024  # rows per grid step (tunable)


def _round_up(x, m):
    return ((x + m - 1) // m) * m


# ----------------------------- Pallas kernel -------------------------------

def ncf_kernel(u_ref, i_ref, w1u_ref, w1i_ref, w2_ref, w3_ref, w4_ref,
               c_ref, head_ref, out_ref):
    f32 = jnp.float32
    two_e = u_ref.shape[1]
    d1 = w1u_ref.shape[1]
    d2 = w2_ref.shape[1]
    d3 = w3_ref.shape[1]
    d4 = w4_ref.shape[1]

    u = u_ref[...]          # (Bt, 2E) bf16, packed [user_gmf | user_mlp]
    it = i_ref[...]         # (Bt, 2E) bf16, packed [item_gmf | item_mlp]

    # GMF branch fused with the GMF half of the final-layer weight; the MLP
    # lanes of the packed rows are zeroed by the padded weight vector.
    wf_gmf = c_ref[5:6, :two_e]                                        # (1, 2E)
    gmf_sum = jnp.sum(u.astype(f32) * it.astype(f32) * wf_gmf, axis=-1)  # (Bt,)

    # MLP branch: bf16 MXU inputs, f32 accumulation, bias/ReLU in f32.
    # Layer 1 uses zero-extended split weights so the packed 128-lane rows
    # are consumed directly (no HBM concat, no sub-lane slicing).
    b1 = c_ref[0:1, :d1]
    h = (jnp.dot(u, w1u_ref[...], preferred_element_type=f32)
         + jnp.dot(it, w1i_ref[...], preferred_element_type=f32) + b1)
    h = jnp.maximum(h, 0.0).astype(jnp.bfloat16)

    b2 = c_ref[1:2, :d2]
    h = jnp.maximum(
        jnp.dot(h, w2_ref[...], preferred_element_type=f32) + b2, 0.0
    ).astype(jnp.bfloat16)

    b3 = c_ref[2:3, :d3]
    h = jnp.maximum(
        jnp.dot(h, w3_ref[...], preferred_element_type=f32) + b3, 0.0
    ).astype(jnp.bfloat16)

    b4 = c_ref[3:4, :d4]
    h = jnp.maximum(
        jnp.dot(h, w4_ref[...], preferred_element_type=f32) + b4, 0.0
    )                                                                  # (Bt, d4) f32

    wf_mlp = c_ref[4:5, :d4]
    mlp_sum = jnp.sum(h * wf_mlp, axis=-1)                             # (Bt,)

    # NeuMF head: raw = <neumf, Wf> + bf ; out = sigmoid(raw) * scale + shift
    raw = gmf_sum + mlp_sum + head_ref[0]
    out = jax.nn.sigmoid(raw) * head_ref[1] + head_ref[2]
    out_ref[...] = out[None, :]                        # lane-dense (1, Bt) store


# --------------------------- Parameter preparation --------------------------

def prepare_params(params, eps=1e-5):
    """One-time prep: fold eval-mode BatchNorm into the Linear weights,
    pre-transpose to (in, out), cast weights/embeddings to bf16, pack the
    user/item embedding tables into single lane-dense tables, zero-extend the
    split W1 halves, and consolidate biases/head weights."""
    f32 = jnp.float32

    def fold(W, b, gamma, beta, mean, var):
        s = gamma / jnp.sqrt(var + eps)                   # (out,)
        W_eff = (W * s[:, None]).T                        # (in, out)
        b_eff = (b - mean) * s + beta                     # (out,)
        return W_eff, b_eff

    w1, b1 = fold(params["W1"], params["b1"], params["g1"], params["be1"], params["m1"], params["v1"])
    w2, b2 = fold(params["W2"], params["b2"], params["g2"], params["be2"], params["m2"], params["v2"])
    w3, b3 = fold(params["W3"], params["b3"], params["g3"], params["be3"], params["m3"], params["v3"])
    w4, b4 = fold(params["W4"], params["b4"], params["g4"], params["be4"], params["m4"], params["v4"])

    E = params["emb_user_gmf"].shape[1]
    d1, d4 = w1.shape[1], w4.shape[1]
    for width in (2 * E, d1, w2.shape[1], w3.shape[1], d4):
        assert width <= 128, "consts packing assumes feature widths <= 128"

    # Packed lane-dense embedding tables: one (rows, 2E) bf16 table per side.
    user_tab = jnp.concatenate(
        [params["emb_user_gmf"], params["emb_user_mlp"]], axis=1).astype(jnp.bfloat16)
    item_tab = jnp.concatenate(
        [params["emb_item_gmf"], params["emb_item_mlp"]], axis=1).astype(jnp.bfloat16)

    # Split W1 and zero-extend so layer 1 consumes the full packed rows
    # (zeros in the GMF-lane positions).
    zeros = jnp.zeros((E, d1), f32)
    w1u = jnp.concatenate([zeros, w1[:E]], axis=0).astype(jnp.bfloat16)   # (2E, d1)
    w1i = jnp.concatenate([zeros, w1[E:]], axis=0).astype(jnp.bfloat16)   # (2E, d1)

    Wf = params["Wf"].astype(f32)                         # (1, E + d4)
    wf_mlp = Wf[0, E:]                                    # (d4,)
    wf_gmf = jnp.zeros((128,), f32).at[:E].set(Wf[0, :E])  # GMF lanes only, rest 0

    def lane_pad(v):
        v = jnp.asarray(v, f32).reshape(-1)
        return jnp.zeros((128,), f32).at[: v.shape[0]].set(v)

    # Consolidated small constants: (8, 128) f32 block, statically sliced
    # in-kernel (one input operand / one startup DMA instead of six).
    consts = jnp.stack([
        lane_pad(b1), lane_pad(b2), lane_pad(b3), lane_pad(b4),
        lane_pad(wf_mlp), wf_gmf,
        jnp.zeros((128,), f32), jnp.zeros((128,), f32),
    ])

    head = jnp.stack([params["bf"][0], params["scale"], params["shift"]]).astype(f32)

    return {
        "user_tab": user_tab, "item_tab": item_tab,
        "w1u": w1u, "w1i": w1i,
        "w2": w2.astype(jnp.bfloat16),
        "w3": w3.astype(jnp.bfloat16),
        "w4": w4.astype(jnp.bfloat16),
        "consts": consts, "head": head,
    }


# ------------------------------ Wrapper -------------------------------------

def ncf_forward(prepared, user, item, batch_tile=BATCH_TILE):
    """NCF forward. user/item: int32 index vectors of shape (B,). Returns (B,)."""
    B = user.shape[0]
    two_e = prepared["user_tab"].shape[1]

    # Tile choice: lane-aligned (multiple of 128), capped at batch_tile, and
    # split into >= 2 grid steps for large batches so v7x's two TensorCores
    # both get work (no-op on single-TC v5e/v6e).
    bt = _round_up(max(int(batch_tile), 128), 128)
    bt = min(bt, _round_up(B, 128))
    if B >= 256:
        bt = min(bt, _round_up(pl.cdiv(B, 2), 128))
    nb = pl.cdiv(B, bt)
    Bp = nb * bt

    if Bp != B:
        user = jnp.pad(user, (0, Bp - B))
        item = jnp.pad(item, (0, Bp - B))

    # Embedding gathers on the packed (rows, 2E) bf16 tables (XLA glue).
    # allow_input_fusion below lets XLA try to fuse these producers into the
    # Pallas input pipeline and skip the HBM round-trip of the gathered rows.
    u_rows = prepared["user_tab"][user]                   # (Bp, 2E) bf16
    i_rows = prepared["item_tab"][item]                   # (Bp, 2E) bf16

    row_spec = pl.BlockSpec((bt, two_e), lambda i: (i, 0))

    def const(a):
        return pl.BlockSpec(a.shape, lambda i: (0, 0))

    head_spec = pl.BlockSpec((3,), lambda i: (0,),
                             memory_space=pltpu.MemorySpace.SMEM)

    in_specs = [
        row_spec, row_spec,
        const(prepared["w1u"]), const(prepared["w1i"]),
        const(prepared["w2"]), const(prepared["w3"]), const(prepared["w4"]),
        const(prepared["consts"]),
        head_spec,
    ]

    out = pl.pallas_call(
        ncf_kernel,
        out_shape=jax.ShapeDtypeStruct((nb, bt), jnp.float32),
        grid=(nb,),
        in_specs=in_specs,
        out_specs=pl.BlockSpec((1, bt), lambda i: (i, 0)),   # lane-dense output rows
        compiler_params=pltpu.CompilerParams(
            dimension_semantics=("parallel",),      # v7x: shard tiles over 2 TCs
            vmem_limit_bytes=32 * 1024 * 1024,      # far above footprint; safe on v7x
            allow_input_fusion=[True, True, False, False, False, False, False,
                                False, False],
        ),
    )(u_rows, i_rows,
      prepared["w1u"], prepared["w1i"],
      prepared["w2"], prepared["w3"], prepared["w4"],
      prepared["consts"], prepared["head"])

    return out.reshape(-1)[:B]


# --------------------------- Parameter init ----------------------------------

def init_params(key, num_users, num_items, embedding_dim=64, mlp_dims=(128, 64, 32, 16)):
    keys = jax.random.split(key, 16)
    ki = iter(keys)

    def emb(k, n, d):
        return (0.01 * jax.random.normal(k, (n, d))).astype(jnp.float32)

    def xavier(k, out_dim, in_dim):
        bound = math.sqrt(6.0 / (in_dim + out_dim))
        return jax.random.uniform(k, (out_dim, in_dim), jnp.float32, -bound, bound)

    params = {
        "emb_user_gmf": emb(next(ki), num_users, embedding_dim),
        "emb_item_gmf": emb(next(ki), num_items, embedding_dim),
        "emb_user_mlp": emb(next(ki), num_users, embedding_dim),
        "emb_item_mlp": emb(next(ki), num_items, embedding_dim),
    }

    in_dim = embedding_dim * 2
    for i, dim in enumerate(mlp_dims, start=1):
        params[f"W{i}"] = xavier(next(ki), dim, in_dim)        # PyTorch layout (out, in)
        params[f"b{i}"] = jnp.zeros((dim,), jnp.float32)
        # BatchNorm1d params (eval/running stats at init values)
        params[f"g{i}"] = jnp.ones((dim,), jnp.float32)
        params[f"be{i}"] = jnp.zeros((dim,), jnp.float32)
        params[f"m{i}"] = jnp.zeros((dim,), jnp.float32)
        params[f"v{i}"] = jnp.ones((dim,), jnp.float32)
        in_dim = dim

    params["Wf"] = xavier(next(ki), 1, embedding_dim + mlp_dims[-1])  # (1, E+16)
    params["bf"] = jnp.zeros((1,), jnp.float32)
    params["scale"] = jnp.array(4.0, jnp.float32)
    params["shift"] = jnp.array(1.0, jnp.float32)
    return params


# ------------------------ Pure-JAX reference (check) -------------------------

def ncf_reference(params, user, item):
    eps = 1e-5
    ug = params["emb_user_gmf"][user]
    ig = params["emb_item_gmf"][item]
    gmf = ug * ig
    x = jnp.concatenate([params["emb_user_mlp"][user], params["emb_item_mlp"][item]], -1)
    for i in range(1, 5):
        x = x @ params[f"W{i}"].T + params[f"b{i}"]
        x = (x - params[f"m{i}"]) / jnp.sqrt(params[f"v{i}"] + eps) * params[f"g{i}"] + params[f"be{i}"]
        x = jnp.maximum(x, 0.0)
    neumf = jnp.concatenate([gmf, x], axis=1)
    raw = neumf @ params["Wf"].T + params["bf"]
    return (jax.nn.sigmoid(raw) * params["scale"] + params["shift"])[:, 0]


if __name__ == "__main__":
    key = jax.random.PRNGKey(0)
    pkey, ukey, ikey = jax.random.split(key, 3)

    num_users, num_items = 100, 200
    batch = 8

    params = init_params(pkey, num_users, num_items)
    prepared = prepare_params(params)          # one-time BN fold + packing + bf16 cast

    user = jax.random.randint(ukey, (batch,), 0, num_users, dtype=jnp.int32)
    item = jax.random.randint(ikey, (batch,), 0, num_items, dtype=jnp.int32)

    fwd = jax.jit(ncf_forward)                 # gather + pallas_call in one XLA program
    out = jax.block_until_ready(fwd(prepared, user, item))
    ref = ncf_reference(params, user, item)

    assert out.shape == (batch,)
    # bf16 weights/embeddings vs f32 reference -> loosened tolerance.
    assert jnp.allclose(out, ref, rtol=1e-2, atol=1e-2), (out, ref)

    print("KERNEL_OK")
</pallas_src>

<mosaic_0001>
module attributes {stable_mosaic.version = 11 : i64} {
  func.func @ncf_kernel(%arg0: i32, %arg1: memref<128x128xbf16, #tpu.memory_space<vmem>>, %arg2: memref<128x128xbf16, #tpu.memory_space<vmem>>, %arg3: memref<128x128xbf16, #tpu.memory_space<vmem>>, %arg4: memref<128x128xbf16, #tpu.memory_space<vmem>>, %arg5: memref<128x64xbf16, #tpu.memory_space<vmem>>, %arg6: memref<64x32xbf16, #tpu.memory_space<vmem>>, %arg7: memref<32x16xbf16, #tpu.memory_space<vmem>>, %arg8: memref<8x128xf32, #tpu.memory_space<vmem>>, %arg9: memref<3xf32, #tpu.memory_space<smem>>, %arg10: memref<1x128xf32, #tpu.memory_space<vmem>>) attributes {dimension_semantics = [#tpu.dimension_semantics<parallel>], iteration_bounds = array<i64: 1>, scalar_prefetch = 0 : i64, scratch_operands = 0 : i64, tpu.core_type = #tpu.core_type<tc>, window_params = [{transform_indices = @transform_0, window_bounds = array<i64: 128, 128>}, {transform_indices = @transform_1, window_bounds = array<i64: 128, 128>}, {pipeline_mode = #tpu.pipeline_mode<synchronous>, transform_indices = @transform_2, window_bounds = array<i64: 128, 128>}, {pipeline_mode = #tpu.pipeline_mode<synchronous>, transform_indices = @transform_3, window_bounds = array<i64: 128, 128>}, {pipeline_mode = #tpu.pipeline_mode<synchronous>, transform_indices = @transform_4, window_bounds = array<i64: 128, 64>}, {pipeline_mode = #tpu.pipeline_mode<synchronous>, transform_indices = @transform_5, window_bounds = array<i64: 64, 32>}, {pipeline_mode = #tpu.pipeline_mode<synchronous>, transform_indices = @transform_6, window_bounds = array<i64: 32, 16>}, {pipeline_mode = #tpu.pipeline_mode<synchronous>, transform_indices = @transform_7, window_bounds = array<i64: 8, 128>}, {transform_indices = @transform_8, window_bounds = array<i64: 3>}, {transform_indices = @transform_9, window_bounds = array<i64: 1, 128>}]} {
    %c0 = arith.constant 0 : index
    %c0_0 = arith.constant 0 : index
    %0 = vector.load %arg1[%c0, %c0_0] : memref<128x128xbf16, #tpu.memory_space<vmem>>, vector<128x128xbf16>
    %c0_1 = arith.constant 0 : index
    %c0_2 = arith.constant 0 : index
    %1 = vector.load %arg2[%c0_1, %c0_2] : memref<128x128xbf16, #tpu.memory_space<vmem>>, vector<128x128xbf16>
    %c5 = arith.constant 5 : index
    %c0_3 = arith.constant 0 : index
    %2 = vector.load %arg8[%c5, %c0_3] : memref<8x128xf32, #tpu.memory_space<vmem>>, vector<1x128xf32>
    %3 = arith.extf %0 : vector<128x128xbf16> to vector<128x128xf32>
    %4 = arith.extf %1 : vector<128x128xbf16> to vector<128x128xf32>
    %5 = arith.mulf %3, %4 : vector<128x128xf32>
    %6 = vector.broadcast %2 : vector<1x128xf32> to vector<128x128xf32>
    %7 = arith.mulf %5, %6 : vector<128x128xf32>
    %cst = arith.constant dense<0.000000e+00> : vector<128xf32>
    %8 = vector.multi_reduction <add>, %7, %cst [1] : vector<128x128xf32> to vector<128xf32>
    %c0_4 = arith.constant 0 : index
    %c0_5 = arith.constant 0 : index
    %9 = vector.load %arg8[%c0_4, %c0_5] : memref<8x128xf32, #tpu.memory_space<vmem>>, vector<1x128xf32>
    %c0_6 = arith.constant 0 : index
    %c0_7 = arith.constant 0 : index
    %10 = vector.load %arg3[%c0_6, %c0_7] : memref<128x128xbf16, #tpu.memory_space<vmem>>, vector<128x128xbf16>
    %cst_8 = arith.constant dense<0.000000e+00> : vector<128x128xf32>
    %11 = tpu.matmul %0, %10, %cst_8 {dimension_numbers = #tpu.dot_dimension_numbers<[1], [0], [0], [1], [0, 0, 1, 1], [], []>} : vector<128x128xbf16>, vector<128x128xbf16>, vector<128x128xf32> -> vector<128x128xf32>
    %c0_9 = arith.constant 0 : index
    %c0_10 = arith.constant 0 : index
    %12 = vector.load %arg4[%c0_9, %c0_10] : memref<128x128xbf16, #tpu.memory_space<vmem>>, vector<128x128xbf16>
    %cst_11 = arith.constant dense<0.000000e+00> : vector<128x128xf32>
    %13 = tpu.matmul %1, %12, %cst_11 {dimension_numbers = #tpu.dot_dimension_numbers<[1], [0], [0], [1], [0, 0, 1, 1], [], []>} : vector<128x128xbf16>, vector<128x128xbf16>, vector<128x128xf32> -> vector<128x128xf32>
    %14 = arith.addf %11, %13 : vector<128x128xf32>
    %15 = vector.broadcast %9 : vector<1x128xf32> to vector<128x128xf32>
    %16 = arith.addf %14, %15 : vector<128x128xf32>
    %cst_12 = arith.constant 0.000000e+00 : f32
    %17 = vector.broadcast %cst_12 : f32 to vector<128x128xf32>
    %18 = arith.maximumf %16, %17 : vector<128x128xf32>
    %19 = arith.truncf %18 : vector<128x128xf32> to vector<128x128xbf16>
    %c1 = arith.constant 1 : index
    %c0_13 = arith.constant 0 : index
    %20 = vector.load %arg8[%c1, %c0_13] : memref<8x128xf32, #tpu.memory_space<vmem>>, vector<1x64xf32>
    %c0_14 = arith.constant 0 : index
    %c0_15 = arith.constant 0 : index
    %21 = vector.load %arg5[%c0_14, %c0_15] : memref<128x64xbf16, #tpu.memory_space<vmem>>, vector<128x64xbf16>
    %cst_16 = arith.constant dense<0.000000e+00> : vector<128x64xf32>
    %22 = tpu.matmul %19, %21, %cst_16 {dimension_numbers = #tpu.dot_dimension_numbers<[1], [0], [0], [1], [0, 0, 1, 1], [], []>} : vector<128x128xbf16>, vector<128x64xbf16>, vector<128x64xf32> -> vector<128x64xf32>
    %23 = vector.broadcast %20 : vector<1x64xf32> to vector<128x64xf32>
    %24 = arith.addf %22, %23 : vector<128x64xf32>
    %cst_17 = arith.constant 0.000000e+00 : f32
    %25 = vector.broadcast %cst_17 : f32 to vector<128x64xf32>
    %26 = arith.maximumf %24, %25 : vector<128x64xf32>
    %27 = arith.truncf %26 : vector<128x64xf32> to vector<128x64xbf16>
    %c2 = arith.constant 2 : index
    %c0_18 = arith.constant 0 : index
    %28 = vector.load %arg8[%c2, %c0_18] : memref<8x128xf32, #tpu.memory_space<vmem>>, vector<1x32xf32>
    %c0_19 = arith.constant 0 : index
    %c0_20 = arith.constant 0 : index
    %29 = vector.load %arg6[%c0_19, %c0_20] : memref<64x32xbf16, #tpu.memory_space<vmem>>, vector<64x32xbf16>
    %cst_21 = arith.constant dense<0.000000e+00> : vector<128x32xf32>
    %30 = tpu.matmul %27, %29, %cst_21 {dimension_numbers = #tpu.dot_dimension_numbers<[1], [0], [0], [1], [0, 0, 1, 1], [], []>} : vector<128x64xbf16>, vector<64x32xbf16>, vector<128x32xf32> -> vector<128x32xf32>
    %31 = vector.broadcast %28 : vector<1x32xf32> to vector<128x32xf32>
    %32 = arith.addf %30, %31 : vector<128x32xf32>
    %cst_22 = arith.constant 0.000000e+00 : f32
    %33 = vector.broadcast %cst_22 : f32 to vector<128x32xf32>
    %34 = arith.maximumf %32, %33 : vector<128x32xf32>
    %35 = arith.truncf %34 : vector<128x32xf32> to vector<128x32xbf16>
    %c3 = arith.constant 3 : index
    %c0_23 = arith.constant 0 : index
    %36 = vector.load %arg8[%c3, %c0_23] : memref<8x128xf32, #tpu.memory_space<vmem>>, vector<1x16xf32>
    %c0_24 = arith.constant 0 : index
    %c0_25 = arith.constant 0 : index
    %37 = vector.load %arg7[%c0_24, %c0_25] : memref<32x16xbf16, #tpu.memory_space<vmem>>, vector<32x16xbf16>
    %cst_26 = arith.constant dense<0.000000e+00> : vector<128x16xf32>
    %38 = tpu.matmul %35, %37, %cst_26 {dimension_numbers = #tpu.dot_dimension_numbers<[1], [0], [0], [1], [0, 0, 1, 1], [], []>} : vector<128x32xbf16>, vector<32x16xbf16>, vector<128x16xf32> -> vector<128x16xf32>
    %39 = vector.broadcast %36 : vector<1x16xf32> to vector<128x16xf32>
    %40 = arith.addf %38, %39 : vector<128x16xf32>
    %cst_27 = arith.constant 0.000000e+00 : f32
    %41 = vector.broadcast %cst_27 : f32 to vector<128x16xf32>
    %42 = arith.maximumf %40, %41 : vector<128x16xf32>
    %c4 = arith.constant 4 : index
    %c0_28 = arith.constant 0 : index
    %43 = vector.load %arg8[%c4, %c0_28] : memref<8x128xf32, #tpu.memory_space<vmem>>, vector<1x16xf32>
    %44 = vector.broadcast %43 : vector<1x16xf32> to vector<128x16xf32>
    %45 = arith.mulf %42, %44 : vector<128x16xf32>
    %cst_29 = arith.constant dense<0.000000e+00> : vector<128xf32>
    %46 = vector.multi_reduction <add>, %45, %cst_29 [1] : vector<128x16xf32> to vector<128xf32>
    %47 = arith.addf %8, %46 : vector<128xf32>
    %c0_30 = arith.constant 0 : index
    %48 = memref.load %arg9[%c0_30] : memref<3xf32, #tpu.memory_space<smem>>
    %49 = vector.broadcast %48 : f32 to vector<128xf32>
    %50 = arith.addf %47, %49 : vector<128xf32>
    %51 = arith.negf %50 : vector<128xf32>
    %52 = math.exp %51 : vector<128xf32>
    %cst_31 = arith.constant 1.000000e+00 : f32
    %53 = vector.broadcast %cst_31 : f32 to vector<128xf32>
    %54 = arith.addf %53, %52 : vector<128xf32>
    %55 = arith.divf %53, %54 : vector<128xf32>
    %c1_32 = arith.constant 1 : index
    %56 = memref.load %arg9[%c1_32] : memref<3xf32, #tpu.memory_space<smem>>
    %57 = vector.broadcast %56 : f32 to vector<128xf32>
    %58 = arith.mulf %55, %57 : vector<128xf32>
    %c2_33 = arith.constant 2 : index
    %59 = memref.load %arg9[%c2_33] : memref<3xf32, #tpu.memory_space<smem>>
    %60 = vector.broadcast %59 : f32 to vector<128xf32>
    %61 = arith.addf %58, %60 : vector<128xf32>
    %62 = vector.shape_cast %61 : vector<128xf32> to vector<1x128xf32>
    %c0_34 = arith.constant 0 : index
    %c0_35 = arith.constant 0 : index
    %63 = vector.load %arg10[%c0_34, %c0_35] : memref<1x128xf32, #tpu.memory_space<vmem>>, vector<1x128xf32>
    tpu.vector_store %arg10[%c0_34, %c0_35], %62 {strides = array<i32>} : memref<1x128xf32, #tpu.memory_space<vmem>>, vector<1x128xf32>,
    return
  }
  func.func @transform_0(%arg0: i32) -> (i32, i32) {
    %c0_i32 = arith.constant 0 : i32
    %c0_i32_0 = arith.constant 0 : i32
    return %arg0, %c0_i32 : i32, i32
  }
  func.func @transform_1(%arg0: i32) -> (i32, i32) {
    %c0_i32 = arith.constant 0 : i32
    %c0_i32_0 = arith.constant 0 : i32
    return %arg0, %c0_i32 : i32, i32
  }
  func.func @transform_2(%arg0: i32) -> (i32, i32) {
    %c0_i32 = arith.constant 0 : i32
    %c0_i32_0 = arith.constant 0 : i32
    %c0_i32_1 = arith.constant 0 : i32
    return %c0_i32, %c0_i32_0 : i32, i32
  }
  func.func @transform_3(%arg0: i32) -> (i32, i32) {
    %c0_i32 = arith.constant 0 : i32
    %c0_i32_0 = arith.constant 0 : i32
    %c0_i32_1 = arith.constant 0 : i32
    return %c0_i32, %c0_i32_0 : i32, i32
  }
  func.func @transform_4(%arg0: i32) -> (i32, i32) {
    %c0_i32 = arith.constant 0 : i32
    %c0_i32_0 = arith.constant 0 : i32
    %c0_i32_1 = arith.constant 0 : i32
    return %c0_i32, %c0_i32_0 : i32, i32
  }
  func.func @transform_5(%arg0: i32) -> (i32, i32) {
    %c0_i32 = arith.constant 0 : i32
    %c0_i32_0 = arith.constant 0 : i32
    %c0_i32_1 = arith.constant 0 : i32
    return %c0_i32, %c0_i32_0 : i32, i32
  }
  func.func @transform_6(%arg0: i32) -> (i32, i32) {
    %c0_i32 = arith.constant 0 : i32
    %c0_i32_0 = arith.constant 0 : i32
    %c0_i32_1 = arith.constant 0 : i32
    return %c0_i32, %c0_i32_0 : i32, i32
  }
  func.func @transform_7(%arg0: i32) -> (i32, i32) {
    %c0_i32 = arith.constant 0 : i32
    %c0_i32_0 = arith.constant 0 : i32
    %c0_i32_1 = arith.constant 0 : i32
    return %c0_i32, %c0_i32_0 : i32, i32
  }
  func.func @transform_8(%arg0: i32) -> i32 {
    %c0_i32 = arith.constant 0 : i32
    %c0_i32_0 = arith.constant 0 : i32
    return %c0_i32 : i32
  }
  func.func @transform_9(%arg0: i32) -> (i32, i32) {
    %c0_i32 = arith.constant 0 : i32
    %c0_i32_0 = arith.constant 0 : i32
    return %arg0, %c0_i32 : i32, i32
  }
}

</mosaic_0001>

<llo_original>
// kernel: ncf_forward.1
$region0: #{ncf_forward.1}
  #allocation0 [shape = 'u32[]', space=smem, size = 0x4, offset = 0x4, fixed_abs, tag = 'smem constant byte address 0x4 - core index']
  #allocation1 [shape = 'u32[144,128]{1,0:T(1,128)}', space=vmem, size = 0x12000, scoped, tag = 'internal scratch']
  %s0 = inlined_call_operand.vmem [shape: bf16[128,128], index: 0, kind: input, shape index: {}]
  %s1 = inlined_call_operand.vmem [shape: bf16[128,128], index: 1, kind: input, shape index: {}]
  %s2 = inlined_call_operand.vmem [shape: bf16[128,128], index: 2, kind: input, shape index: {}]
  %s3 = inlined_call_operand.vmem [shape: bf16[128,128], index: 3, kind: input, shape index: {}]
  %s4 = inlined_call_operand.vmem [shape: bf16[128,64], index: 4, kind: input, shape index: {}]
  %s5 = inlined_call_operand.vmem [shape: bf16[64,32], index: 5, kind: input, shape index: {}]
  %s6 = inlined_call_operand.vmem [shape: bf16[32,16], index: 6, kind: input, shape index: {}]
  %s7 = inlined_call_operand.vmem [shape: f32[8,128], index: 7, kind: input, shape index: {}]
  %s8 = inlined_call_operand.vmem [shape: f32[3], index: 8, kind: input, shape index: {}]
  %s9 = inlined_call_operand.vmem [shape: f32[1,128], index: 9, kind: output, shape index: {}]
  %s10 = sld [smem:[#allocation0]]
  $region50: #{ncf_forward.1} parent=0
    _
  %s12 = ssub.s32 1, %s10
  %s13 = scalar_select 0, %s12, %s10
  $region1: #{ncf_forward.1} parent=0
    #allocation2 [shape = 'u8[512]{0}', space=smem, size = 0x200, scoped, tag = 'input window, operand 8, single buffered']
    #allocation3 [shape = 's32[1]{0}', space=sflag, size = 0x4, scoped, tag = 'scoped memory for ncf_forward.1']
    %14 = vsyncpa [#allocation3], 0
    // Predicated region
    $region2: #{ncf_forward.1} parent=1 // pred_check
      _
    $region3: #{ncf_forward.1} parent=1 // pred_check_branch
      %16 = sbr.rel (0) target = $region5
    $region4: #{ncf_forward.1} parent=1 // pred_region
      _
    $region5: #{ncf_forward.1} parent=1 // pred_fallthru
      _
    // Predicated region
    $region6: #{ncf_forward.1} parent=1 // pred_check
      _
    $region7: #{ncf_forward.1} parent=1 // pred_check_branch
      %18 = sbr.rel (0) target = $region9
    $region8: #{ncf_forward.1} parent=1 // pred_region
      _
    $region9: #{ncf_forward.1} parent=1 // pred_fallthru
      _
    // Predicated region
    $region10: #{ncf_forward.1} parent=1 // pred_check
      _
    $region11: #{ncf_forward.1} parent=1 // pred_check_branch
      %20 = sbr.rel (0) target = $region13
    $region12: #{ncf_forward.1} parent=1 // pred_region
      _
    $region13: #{ncf_forward.1} parent=1 // pred_fallthru
      _
    // Predicated region
    $region14: #{ncf_forward.1} parent=1 // pred_check
      _
    $region15: #{ncf_forward.1} parent=1 // pred_check_branch
      %22 = sbr.rel (0) target = $region17
    $region16: #{ncf_forward.1} parent=1 // pred_region
      _
    $region17: #{ncf_forward.1} parent=1 // pred_fallthru
      _
    // Predicated region
    $region18: #{ncf_forward.1} parent=1 // pred_check
      _
    $region19: #{ncf_forward.1} parent=1 // pred_check_branch
      %24 = sbr.rel (0) target = $region21
    $region20: #{ncf_forward.1} parent=1 // pred_region
      _
    $region21: #{ncf_forward.1} parent=1 // pred_fallthru
      _
    // Predicated region
    $region22: #{ncf_forward.1} parent=1 // pred_check
      _
    $region23: #{ncf_forward.1} parent=1 // pred_check_branch
      %26 = sbr.rel (0) target = $region25
    $region24: #{ncf_forward.1} parent=1 // pred_region
      _
    $region25: #{ncf_forward.1} parent=1 // pred_fallthru
      _
    // Predicated region
    $region26: #{ncf_forward.1} parent=1 // pred_check
      _
    $region27: #{ncf_forward.1} parent=1 // pred_check_branch
      %28 = sbr.rel (0) target = $region29
    $region28: #{ncf_forward.1} parent=1 // pred_region
      _
    $region29: #{ncf_forward.1} parent=1 // pred_fallthru
      _
    // Predicated region
    $region30: #{ncf_forward.1} parent=1 // pred_check
      _
    $region31: #{ncf_forward.1} parent=1 // pred_check_branch
      %30 = sbr.rel (0) target = $region33
    $region32: #{ncf_forward.1} parent=1 // pred_region
      _
    $region33: #{ncf_forward.1} parent=1 // pred_fallthru
      _
    // Predicated region
    $region34: #{ncf_forward.1} parent=1 // pred_check
      _
    $region35: #{ncf_forward.1} parent=1 // pred_check_branch
      %32 = sbr.rel (0) target = $region37
    $region36: #{ncf_forward.1} parent=1 // pred_region
      %s34 = ssub.s32 16, 16
      %35 = vsyncadd [#allocation3], %s34
      %s37 = sshll.u32 %s8, 4
      %s38 = int_to_ptr.vmem [resolvable:$true] %s37
      %40 = dma.vmem_to_smem %s38, 16, [#allocation2], [#allocation3]
    $region37: #{ncf_forward.1} parent=1 // pred_fallthru
      _
    // Predicated region
    $region38: #{ncf_forward.1} parent=1 // pred_check
      _
    $region39: #{ncf_forward.1} parent=1 // pred_check_branch
      %42 = sbr.rel (0) target = $region41
    $region40: #{ncf_forward.1} parent=1 // pred_region
      %43 = dma.done [#allocation3], 16
    $region41: #{ncf_forward.1} parent=1 // pred_fallthru
      _
    %44 = sfence
    %v46 = vld [vmem:[%s0] sm:$0xf]
    %v47 = vld [vmem:[%s0 + $0x4] sm:$0xf]
    %v48 = vld [vmem:[%s0 + $0x8] sm:$0xf]
    %v49 = vld [vmem:[%s0 + $0xc] sm:$0xf]
    %v50 = vld [vmem:[%s0 + $0x10] sm:$0xf]
    %v51 = vld [vmem:[%s0 + $0x14] sm:$0xf]
    %v52 = vld [vmem:[%s0 + $0x18] sm:$0xf]
    %v53 = vld [vmem:[%s0 + $0x1c] sm:$0xf]
    %v54 = vld [vmem:[%s0 + $0x20] sm:$0xf]
    %v55 = vld [vmem:[%s0 + $0x24] sm:$0xf]
    %v56 = vld [vmem:[%s0 + $0x28] sm:$0xf]
    %v57 = vld [vmem:[%s0 + $0x2c] sm:$0xf]
    %v58 = vld [vmem:[%s0 + $0x30] sm:$0xf]
    %v59 = vld [vmem:[%s0 + $0x34] sm:$0xf]
    %v60 = vld [vmem:[%s0 + $0x38] sm:$0xf]
    %v61 = vld [vmem:[%s0 + $0x3c] sm:$0xf]
    %v62 = vld [vmem:[%s1] sm:$0xf]
    %v63 = vld [vmem:[%s1 + $0x4] sm:$0xf]
    %v64 = vld [vmem:[%s1 + $0x8] sm:$0xf]
    %v65 = vld [vmem:[%s1 + $0xc] sm:$0xf]
    %v66 = vld [vmem:[%s1 + $0x10] sm:$0xf]
    %v67 = vld [vmem:[%s1 + $0x14] sm:$0xf]
    %v68 = vld [vmem:[%s1 + $0x18] sm:$0xf]
    %v69 = vld [vmem:[%s1 + $0x1c] sm:$0xf]
    %v70 = vld [vmem:[%s1 + $0x20] sm:$0xf]
    %v71 = vld [vmem:[%s1 + $0x24] sm:$0xf]
    %v72 = vld [vmem:[%s1 + $0x28] sm:$0xf]
    %v73 = vld [vmem:[%s1 + $0x2c] sm:$0xf]
    %v74 = vld [vmem:[%s1 + $0x30] sm:$0xf]
    %v75 = vld [vmem:[%s1 + $0x34] sm:$0xf]
    %v76 = vld [vmem:[%s1 + $0x38] sm:$0xf]
    %v77 = vld [vmem:[%s1 + $0x3c] sm:$0xf]
    %v78 = vld [vmem:[%s7 + $0x5] sm:$0x1]
    %v79 = vunpack.c.l.bf16 %v46
    %v80 = vunpack.c.l.bf16 %v47
    %v81 = vunpack.c.l.bf16 %v48
    %v82 = vunpack.c.l.bf16 %v49
    %v83 = vunpack.c.l.bf16 %v50
    %v84 = vunpack.c.l.bf16 %v51
    %v85 = vunpack.c.l.bf16 %v52
    %v86 = vunpack.c.l.bf16 %v53
    %v87 = vunpack.c.l.bf16 %v54
    %v88 = vunpack.c.l.bf16 %v55
    %v89 = vunpack.c.l.bf16 %v56
    %v90 = vunpack.c.l.bf16 %v57
    %v91 = vunpack.c.l.bf16 %v58
    %v92 = vunpack.c.l.bf16 %v59
    %v93 = vunpack.c.l.bf16 %v60
    %v94 = vunpack.c.l.bf16 %v61
    %v95 = vunpack.c.l.bf16 %v62
    %v96 = vunpack.c.l.bf16 %v63
    %v97 = vunpack.c.l.bf16 %v64
    %v98 = vunpack.c.l.bf16 %v65
    %v99 = vunpack.c.l.bf16 %v66
    %v100 = vunpack.c.l.bf16 %v67
    %v101 = vunpack.c.l.bf16 %v68
    %v102 = vunpack.c.l.bf16 %v69
    %v103 = vunpack.c.l.bf16 %v70
    %v104 = vunpack.c.l.bf16 %v71
    %v105 = vunpack.c.l.bf16 %v72
    %v106 = vunpack.c.l.bf16 %v73
    %v107 = vunpack.c.l.bf16 %v74
    %v108 = vunpack.c.l.bf16 %v75
    %v109 = vunpack.c.l.bf16 %v76
    %v110 = vunpack.c.l.bf16 %v77
    %v111 = vmul.f32 %v79, %v95
    %v112 = vmul.f32 %v80, %v96
    %v113 = vmul.f32 %v81, %v97
    %v114 = vmul.f32 %v82, %v98
    %v115 = vmul.f32 %v83, %v99
    %v116 = vmul.f32 %v84, %v100
    %v117 = vmul.f32 %v85, %v101
    %v118 = vmul.f32 %v86, %v102
    %v119 = vmul.f32 %v87, %v103
    %v120 = vmul.f32 %v88, %v104
    %v121 = vmul.f32 %v89, %v105
    %v122 = vmul.f32 %v90, %v106
    %v123 = vmul.f32 %v91, %v107
    %v124 = vmul.f32 %v92, %v108
    %v125 = vmul.f32 %v93, %v109
    %v126 = vmul.f32 %v94, %v110
    %v127 = vlaneseq
    %v128 = vshrl.u32 %v127, 7
    %v129 = vsub.s32 0, %v128
    %v130 = vrot.slane %v78, %v129
    %v131 = vmul.f32 %v111, %v130
    %v132 = vmul.f32 %v112, %v130
    %v133 = vmul.f32 %v113, %v130
    %v134 = vmul.f32 %v114, %v130
    %v135 = vmul.f32 %v115, %v130
    %v136 = vmul.f32 %v116, %v130
    %v137 = vmul.f32 %v117, %v130
    %v138 = vmul.f32 %v118, %v130
    %v139 = vmul.f32 %v119, %v130
    %v140 = vmul.f32 %v120, %v130
    %v141 = vmul.f32 %v121, %v130
    %v142 = vmul.f32 %v122, %v130
    %v143 = vmul.f32 %v123, %v130
    %v144 = vmul.f32 %v124, %v130
    %v145 = vmul.f32 %v125, %v130
    %v146 = vmul.f32 %v126, %v130
    %147 = vadd.xlane.f32.xlu0 %v131
    %v148 = vpop.xlane.xlu0 %147
    %149 = vadd.xlane.f32.xlu0 %v132
    %v150 = vpop.xlane.xlu0 %149
    %151 = vadd.xlane.f32.xlu0 %v133
    %v152 = vpop.xlane.xlu0 %151
    %153 = vadd.xlane.f32.xlu0 %v134
    %v154 = vpop.xlane.xlu0 %153
    %155 = vadd.xlane.f32.xlu0 %v135
    %v156 = vpop.xlane.xlu0 %155
    %157 = vadd.xlane.f32.xlu0 %v136
    %v158 = vpop.xlane.xlu0 %157
    %159 = vadd.xlane.f32.xlu0 %v137
    %v160 = vpop.xlane.xlu0 %159
    %161 = vadd.xlane.f32.xlu0 %v138
    %v162 = vpop.xlane.xlu0 %161
    %163 = vadd.xlane.f32.xlu0 %v139
    %v164 = vpop.xlane.xlu0 %163
    %165 = vadd.xlane.f32.xlu0 %v140
    %v166 = vpop.xlane.xlu0 %165
    %167 = vadd.xlane.f32.xlu0 %v141
    %v168 = vpop.xlane.xlu0 %167
    %169 = vadd.xlane.f32.xlu0 %v142
    %v170 = vpop.xlane.xlu0 %169
    %171 = vadd.xlane.f32.xlu0 %v143
    %v172 = vpop.xlane.xlu0 %171
    %173 = vadd.xlane.f32.xlu0 %v144
    %v174 = vpop.xlane.xlu0 %173
    %175 = vadd.xlane.f32.xlu0 %v145
    %v176 = vpop.xlane.xlu0 %175
    %177 = vadd.xlane.f32.xlu0 %v146
    %v178 = vpop.xlane.xlu0 %177
    %v179 = vld [vmem:[%s7] sm:$0x1]
    %v180 = vld [vmem:[%s2] sm:$0xf]
    %v181 = vld [vmem:[%s2 + $0x4] sm:$0xf]
    %v182 = vld [vmem:[%s2 + $0x8] sm:$0xf]
    %v183 = vld [vmem:[%s2 + $0xc] sm:$0xf]
    %v184 = vld [vmem:[%s2 + $0x10] sm:$0xf]
    %v185 = vld [vmem:[%s2 + $0x14] sm:$0xf]
    %v186 = vld [vmem:[%s2 + $0x18] sm:$0xf]
    %v187 = vld [vmem:[%s2 + $0x1c] sm:$0xf]
    %v188 = vld [vmem:[%s2 + $0x20] sm:$0xf]
    %v189 = vld [vmem:[%s2 + $0x24] sm:$0xf]
    %v190 = vld [vmem:[%s2 + $0x28] sm:$0xf]
    %v191 = vld [vmem:[%s2 + $0x2c] sm:$0xf]
    %v192 = vld [vmem:[%s2 + $0x30] sm:$0xf]
    %v193 = vld [vmem:[%s2 + $0x34] sm:$0xf]
    %v194 = vld [vmem:[%s2 + $0x38] sm:$0xf]
    %v195 = vld [vmem:[%s2 + $0x3c] sm:$0xf]
    %v196 = vld [vmem:[%s3] sm:$0xf]
    %v197 = vld [vmem:[%s3 + $0x4] sm:$0xf]
    %v198 = vld [vmem:[%s3 + $0x8] sm:$0xf]
    %v199 = vld [vmem:[%s3 + $0xc] sm:$0xf]
    %v200 = vld [vmem:[%s3 + $0x10] sm:$0xf]
    %v201 = vld [vmem:[%s3 + $0x14] sm:$0xf]
    %v202 = vld [vmem:[%s3 + $0x18] sm:$0xf]
    %v203 = vld [vmem:[%s3 + $0x1c] sm:$0xf]
    %v204 = vld [vmem:[%s3 + $0x20] sm:$0xf]
    %v205 = vld [vmem:[%s3 + $0x24] sm:$0xf]
    %v206 = vld [vmem:[%s3 + $0x28] sm:$0xf]
    %v207 = vld [vmem:[%s3 + $0x2c] sm:$0xf]
    %v208 = vld [vmem:[%s3 + $0x30] sm:$0xf]
    %v209 = vld [vmem:[%s3 + $0x34] sm:$0xf]
    %v210 = vld [vmem:[%s3 + $0x38] sm:$0xf]
    %v211 = vld [vmem:[%s3 + $0x3c] sm:$0xf]
    %v228 = vunpack.c.l.b16 %v62
    %v229 = vunpack.c.l.b16 %v63
    %v230 = vunpack.c.l.b16 %v64
    %v231 = vunpack.c.l.b16 %v65
    %v232 = vunpack.c.l.b16 %v66
    %v233 = vunpack.c.l.b16 %v67
    %v234 = vunpack.c.l.b16 %v68
    %v235 = vunpack.c.l.b16 %v69
    %v236 = vunpack.c.l.b16 %v70
    %v237 = vunpack.c.l.b16 %v71
    %v238 = vunpack.c.l.b16 %v72
    %v239 = vunpack.c.l.b16 %v73
    %v240 = vunpack.c.l.b16 %v74
    %v241 = vunpack.c.l.b16 %v75
    %v242 = vunpack.c.l.b16 %v76
    %v243 = vunpack.c.l.b16 %v77
    %v244 = vpack.c.b16 %v229, %v228
    %v245 = vpack.c.b16 %v231, %v230
    %v246 = vpack.c.b16 %v233, %v232
    %v247 = vpack.c.b16 %v235, %v234
    %v248 = vpack.c.b16 %v237, %v236
    %v249 = vpack.c.b16 %v239, %v238
    %v250 = vpack.c.b16 %v241, %v240
    %v251 = vpack.c.b16 %v243, %v242
    %v276 = vunpack.c.l.b16 %v196
    %v277 = vunpack.c.l.b16 %v197
    %v278 = vunpack.c.l.b16 %v198
    %v279 = vunpack.c.l.b16 %v199
    %v280 = vunpack.c.l.b16 %v200
    %v281 = vunpack.c.l.b16 %v201
    %v282 = vunpack.c.l.b16 %v202
    %v283 = vunpack.c.l.b16 %v203
    %v284 = vunpack.c.l.b16 %v204
    %v285 = vunpack.c.l.b16 %v205
    %v286 = vunpack.c.l.b16 %v206
    %v287 = vunpack.c.l.b16 %v207
    %v288 = vunpack.c.l.b16 %v208
    %v289 = vunpack.c.l.b16 %v209
    %v290 = vunpack.c.l.b16 %v210
    %v291 = vunpack.c.l.b16 %v211
    %v292 = vpack.c.b16 %v277, %v276
    %v293 = vpack.c.b16 %v279, %v278
    %v294 = vpack.c.b16 %v281, %v280
    %v295 = vpack.c.b16 %v283, %v282
    %v296 = vpack.c.b16 %v285, %v284
    %v297 = vpack.c.b16 %v287, %v286
    %v298 = vpack.c.b16 %v289, %v288
    %v299 = vpack.c.b16 %v291, %v290
    %308 = vmatprep.subr.bf16.mxu0 0
    %309 = vmatpush1.bf16.msra.mxu0 %v299
    %310 = vmatprep.subr.bf16.mxu0 0
    %311 = vmatpush1.bf16.msra.mxu0 %v298
    %312 = vmatprep.subr.bf16.mxu0 0
    %313 = vmatpush1.bf16.msra.mxu0 %v297
    %314 = vmatprep.subr.bf16.mxu0 0
    %315 = vmatpush1.bf16.msra.mxu0 %v296
    %316 = vmatprep.subr.bf16.mxu0 0
    %317 = vmatpush1.bf16.msra.mxu0 %v295
    %318 = vmatprep.subr.bf16.mxu0 0
    %319 = vmatpush1.bf16.msra.mxu0 %v294
    %320 = vmatprep.subr.bf16.mxu0 0
    %321 = vmatpush1.bf16.msra.mxu0 %v293
    %322 = vmatprep.subr.bf16.mxu0 0
    %323 = vmatpush1.bf16.msra.mxu0 %v292
    %324 = vmatprep.subr.bf16.mxu0 0
    %325 = vmatpush2.bf16.msra.mxu0 0
    %326 = vmatprep.subr.bf16.mxu0 0
    %327 = vmatpush2.bf16.msra.mxu0 0
    %328 = vmatprep.subr.bf16.mxu0 0
    %329 = vmatpush2.bf16.msra.mxu0 0
    %330 = vmatprep.subr.bf16.mxu0 0
    %331 = vmatpush2.bf16.msra.mxu0 0
    %332 = vmatprep.subr.bf16.mxu0 0
    %333 = vmatpush2.bf16.msra.mxu0 0
    %334 = vmatprep.subr.bf16.mxu0 0
    %335 = vmatpush2.bf16.msra.mxu0 0
    %336 = vmatprep.subr.bf16.mxu0 0
    %337 = vmatpush2.bf16.msra.mxu0 0
    %338 = vmatprep.subr.bf16.mxu0 0
    %339 = vmatpush2.bf16.msra.mxu0 0
    %340 = vmatprep.mubr.bf16.mxu0 0
    %341 = vmatmul.mubr.bf16.gmra.mxu0 %v244
    %v342 = vpop.f32.mrf.mxu0
    %v343 = vadd.f32 0.0, %v342
    %v344 = vpop.f32.mrf.mxu0
    %v345 = vpop.f32.mrf.mxu0
    %v346 = vadd.f32 0.0, %v345
    %v347 = vpop.f32.mrf.mxu0
    %348 = vmatprep.mubr.bf16.mxu0 0
    %349 = vmatmul.mubr.bf16.gmra.mxu0 %v245
    %v350 = vpop.f32.mrf.mxu0
    %v351 = vadd.f32 0.0, %v350
    %v352 = vpop.f32.mrf.mxu0
    %v353 = vpop.f32.mrf.mxu0
    %v354 = vadd.f32 0.0, %v353
    %v355 = vpop.f32.mrf.mxu0
    %356 = vmatprep.mubr.bf16.mxu0 0
    %357 = vmatmul.mubr.bf16.gmra.mxu0 %v246
    %v358 = vpop.f32.mrf.mxu0
    %v359 = vadd.f32 0.0, %v358
    %v360 = vpop.f32.mrf.mxu0
    %v361 = vpop.f32.mrf.mxu0
    %v362 = vadd.f32 0.0, %v361
    %v363 = vpop.f32.mrf.mxu0
    %364 = vmatprep.mubr.bf16.mxu0 0
    %365 = vmatmul.mubr.bf16.gmra.mxu0 %v247
    %v366 = vpop.f32.mrf.mxu0
    %v367 = vadd.f32 0.0, %v366
    %v368 = vpop.f32.mrf.mxu0
    %v369 = vpop.f32.mrf.mxu0
    %v370 = vadd.f32 0.0, %v369
    %v371 = vpop.f32.mrf.mxu0
    %372 = vmatprep.mubr.bf16.mxu0 0
    %373 = vmatmul.mubr.bf16.gmra.mxu0 %v248
    %v374 = vpop.f32.mrf.mxu0
    %v375 = vadd.f32 0.0, %v374
    %v376 = vpop.f32.mrf.mxu0
    %v377 = vpop.f32.mrf.mxu0
    %v378 = vadd.f32 0.0, %v377
    %v379 = vpop.f32.mrf.mxu0
    %380 = vmatprep.mubr.bf16.mxu0 0
    %381 = vmatmul.mubr.bf16.gmra.mxu0 %v249
    %v382 = vpop.f32.mrf.mxu0
    %v383 = vadd.f32 0.0, %v382
    %v384 = vpop.f32.mrf.mxu0
    %v385 = vpop.f32.mrf.mxu0
    %v386 = vadd.f32 0.0, %v385
    %v387 = vpop.f32.mrf.mxu0
    %388 = vmatprep.mubr.bf16.mxu0 0
    %389 = vmatmul.mubr.bf16.gmra.mxu0 %v250
    %v390 = vpop.f32.mrf.mxu0
    %v391 = vadd.f32 0.0, %v390
    %v392 = vpop.f32.mrf.mxu0
    %v393 = vpop.f32.mrf.mxu0
    %v394 = vadd.f32 0.0, %v393
    %v395 = vpop.f32.mrf.mxu0
    %396 = vmatprep.mubr.bf16.mxu0 0
    %397 = vmatmul.mubr.bf16.gmra.mxu0 %v251
    %v398 = vpop.f32.mrf.mxu0
    %v399 = vadd.f32 0.0, %v398
    %v400 = vpop.f32.mrf.mxu0
    %v401 = vpop.f32.mrf.mxu0
    %v402 = vadd.f32 0.0, %v401
    %v403 = vpop.f32.mrf.mxu0
    %404 = vdwg.mxu0
    %v421 = vunpack.c.l.b16 %v46
    %v422 = vunpack.c.l.b16 %v47
    %v423 = vunpack.c.l.b16 %v48
    %v424 = vunpack.c.l.b16 %v49
    %v425 = vunpack.c.l.b16 %v50
    %v426 = vunpack.c.l.b16 %v51
    %v427 = vunpack.c.l.b16 %v52
    %v428 = vunpack.c.l.b16 %v53
    %v429 = vunpack.c.l.b16 %v54
    %v430 = vunpack.c.l.b16 %v55
    %v431 = vunpack.c.l.b16 %v56
    %v432 = vunpack.c.l.b16 %v57
    %v433 = vunpack.c.l.b16 %v58
    %v434 = vunpack.c.l.b16 %v59
    %v435 = vunpack.c.l.b16 %v60
    %v436 = vunpack.c.l.b16 %v61
    %v437 = vpack.c.b16 %v422, %v421
    %v438 = vpack.c.b16 %v424, %v423
    %v439 = vpack.c.b16 %v426, %v425
    %v440 = vpack.c.b16 %v428, %v427
    %v441 = vpack.c.b16 %v430, %v429
    %v442 = vpack.c.b16 %v432, %v431
    %v443 = vpack.c.b16 %v434, %v433
    %v444 = vpack.c.b16 %v436, %v435
    %v469 = vunpack.c.l.b16 %v180
    %v470 = vunpack.c.l.b16 %v181
    %v471 = vunpack.c.l.b16 %v182
    %v472 = vunpack.c.l.b16 %v183
    %v473 = vunpack.c.l.b16 %v184
    %v474 = vunpack.c.l.b16 %v185
    %v475 = vunpack.c.l.b16 %v186
    %v476 = vunpack.c.l.b16 %v187
    %v477 = vunpack.c.l.b16 %v188
    %v478 = vunpack.c.l.b16 %v189
    %v479 = vunpack.c.l.b16 %v190
    %v480 = vunpack.c.l.b16 %v191
    %v481 = vunpack.c.l.b16 %v192
    %v482 = vunpack.c.l.b16 %v193
    %v483 = vunpack.c.l.b16 %v194
    %v484 = vunpack.c.l.b16 %v195
    %v485 = vpack.c.b16 %v470, %v469
    %v486 = vpack.c.b16 %v472, %v471
    %v487 = vpack.c.b16 %v474, %v473
    %v488 = vpack.c.b16 %v476, %v475
    %v489 = vpack.c.b16 %v478, %v477
    %v490 = vpack.c.b16 %v480, %v479
    %v491 = vpack.c.b16 %v482, %v481
    %v492 = vpack.c.b16 %v484, %v483
    %501 = vmatprep.subr.bf16.mxu0 0
    %502 = vmatpush1.bf16.msra.mxu0 %v492
    %503 = vmatprep.subr.bf16.mxu0 0
    %504 = vmatpush1.bf16.msra.mxu0 %v491
    %505 = vmatprep.subr.bf16.mxu0 0
    %506 = vmatpush1.bf16.msra.mxu0 %v490
    %507 = vmatprep.subr.bf16.mxu0 0
    %508 = vmatpush1.bf16.msra.mxu0 %v489
    %509 = vmatprep.subr.bf16.mxu0 0
    %510 = vmatpush1.bf16.msra.mxu0 %v488
    %511 = vmatprep.subr.bf16.mxu0 0
    %512 = vmatpush1.bf16.msra.mxu0 %v487
    %513 = vmatprep.subr.bf16.mxu0 0
    %514 = vmatpush1.bf16.msra.mxu0 %v486
    %515 = vmatprep.subr.bf16.mxu0 0
    %516 = vmatpush1.bf16.msra.mxu0 %v485
    %517 = vmatprep.subr.bf16.mxu0 0
    %518 = vmatpush2.bf16.msra.mxu0 0
    %519 = vmatprep.subr.bf16.mxu0 0
    %520 = vmatpush2.bf16.msra.mxu0 0
    %521 = vmatprep.subr.bf16.mxu0 0
    %522 = vmatpush2.bf16.msra.mxu0 0
    %523 = vmatprep.subr.bf16.mxu0 0
    %524 = vmatpush2.bf16.msra.mxu0 0
    %525 = vmatprep.subr.bf16.mxu0 0
    %526 = vmatpush2.bf16.msra.mxu0 0
    %527 = vmatprep.subr.bf16.mxu0 0
    %528 = vmatpush2.bf16.msra.mxu0 0
    %529 = vmatprep.subr.bf16.mxu0 0
    %530 = vmatpush2.bf16.msra.mxu0 0
    %531 = vmatprep.subr.bf16.mxu0 0
    %532 = vmatpush2.bf16.msra.mxu0 0
    %533 = vmatprep.mubr.bf16.mxu0 0
    %534 = vmatmul.mubr.bf16.gmra.mxu0 %v437
    %v535 = vpop.f32.mrf.mxu0
    %v536 = vadd.f32 %v343, %v535
    %v537 = vpop.f32.mrf.mxu0
    %v538 = vpop.f32.mrf.mxu0
    %v539 = vadd.f32 %v346, %v538
    %v540 = vpop.f32.mrf.mxu0
    %541 = vmatprep.mubr.bf16.mxu0 0
    %542 = vmatmul.mubr.bf16.gmra.mxu0 %v438
    %v543 = vpop.f32.mrf.mxu0
    %v544 = vadd.f32 %v351, %v543
    %v545 = vpop.f32.mrf.mxu0
    %v546 = vpop.f32.mrf.mxu0
    %v547 = vadd.f32 %v354, %v546
    %v548 = vpop.f32.mrf.mxu0
    %549 = vmatprep.mubr.bf16.mxu0 0
    %550 = vmatmul.mubr.bf16.gmra.mxu0 %v439
    %v551 = vpop.f32.mrf.mxu0
    %v552 = vadd.f32 %v359, %v551
    %v553 = vpop.f32.mrf.mxu0
    %v554 = vpop.f32.mrf.mxu0
    %v555 = vadd.f32 %v362, %v554
    %v556 = vpop.f32.mrf.mxu0
    %557 = vmatprep.mubr.bf16.mxu0 0
    %558 = vmatmul.mubr.bf16.gmra.mxu0 %v440
    %v559 = vpop.f32.mrf.mxu0
    %v560 = vadd.f32 %v367, %v559
    %v561 = vpop.f32.mrf.mxu0
    %v562 = vpop.f32.mrf.mxu0
    %v563 = vadd.f32 %v370, %v562
    %v564 = vpop.f32.mrf.mxu0
    %565 = vmatprep.mubr.bf16.mxu0 0
    %566 = vmatmul.mubr.bf16.gmra.mxu0 %v441
    %v567 = vpop.f32.mrf.mxu0
    %v568 = vadd.f32 %v375, %v567
    %v569 = vpop.f32.mrf.mxu0
    %v570 = vpop.f32.mrf.mxu0
    %v571 = vadd.f32 %v378, %v570
    %v572 = vpop.f32.mrf.mxu0
    %573 = vmatprep.mubr.bf16.mxu0 0
    %574 = vmatmul.mubr.bf16.gmra.mxu0 %v442
    %v575 = vpop.f32.mrf.mxu0
    %v576 = vadd.f32 %v383, %v575
    %v577 = vpop.f32.mrf.mxu0
    %v578 = vpop.f32.mrf.mxu0
    %v579 = vadd.f32 %v386, %v578
    %v580 = vpop.f32.mrf.mxu0
    %581 = vmatprep.mubr.bf16.mxu0 0
    %582 = vmatmul.mubr.bf16.gmra.mxu0 %v443
    %v583 = vpop.f32.mrf.mxu0
    %v584 = vadd.f32 %v391, %v583
    %v585 = vpop.f32.mrf.mxu0
    %v586 = vpop.f32.mrf.mxu0
    %v587 = vadd.f32 %v394, %v586
    %v588 = vpop.f32.mrf.mxu0
    %589 = vmatprep.mubr.bf16.mxu0 0
    %590 = vmatmul.mubr.bf16.gmra.mxu0 %v444
    %v591 = vpop.f32.mrf.mxu0
    %v592 = vadd.f32 %v399, %v591
    %v593 = vpop.f32.mrf.mxu0
    %v594 = vpop.f32.mrf.mxu0
    %v595 = vadd.f32 %v402, %v594
    %v596 = vpop.f32.mrf.mxu0
    %597 = vdwg.mxu0
    %v598 = vlaneseq
    %v599 = vshrl.u32 %v598, 7
    %v600 = vsub.s32 0, %v599
    %v601 = vrot.slane %v179, %v600
    %v602 = vadd.f32 %v536, %v601
    %v603 = vadd.f32 %v539, %v601
    %v604 = vadd.f32 %v544, %v601
    %v605 = vadd.f32 %v547, %v601
    %v606 = vadd.f32 %v552, %v601
    %v607 = vadd.f32 %v555, %v601
    %v608 = vadd.f32 %v560, %v601
    %v609 = vadd.f32 %v563, %v601
    %v610 = vadd.f32 %v568, %v601
    %v611 = vadd.f32 %v571, %v601
    %v612 = vadd.f32 %v576, %v601
    %v613 = vadd.f32 %v579, %v601
    %v614 = vadd.f32 %v584, %v601
    %v615 = vadd.f32 %v587, %v601
    %v616 = vadd.f32 %v592, %v601
    %v617 = vadd.f32 %v595, %v601
    %v618 = vmax.f32 %v602, 0.0
    %v619 = vmax.f32 %v603, 0.0
    %v620 = vmax.f32 %v604, 0.0
    %v621 = vmax.f32 %v605, 0.0
    %v622 = vmax.f32 %v606, 0.0
    %v623 = vmax.f32 %v607, 0.0
    %v624 = vmax.f32 %v608, 0.0
    %v625 = vmax.f32 %v609, 0.0
    %v626 = vmax.f32 %v610, 0.0
    %v627 = vmax.f32 %v611, 0.0
    %v628 = vmax.f32 %v612, 0.0
    %v629 = vmax.f32 %v613, 0.0
    %v630 = vmax.f32 %v614, 0.0
    %v631 = vmax.f32 %v615, 0.0
    %v632 = vmax.f32 %v616, 0.0
    %v633 = vmax.f32 %v617, 0.0
    %v634 = vpack.c.bf16 %v619, %v618
    %v635 = vpack.c.bf16 %v621, %v620
    %v636 = vpack.c.bf16 %v623, %v622
    %v637 = vpack.c.bf16 %v625, %v624
    %v638 = vpack.c.bf16 %v627, %v626
    %v639 = vpack.c.bf16 %v629, %v628
    %v640 = vpack.c.bf16 %v631, %v630
    %v641 = vpack.c.bf16 %v633, %v632
    %v642 = vld [vmem:[%s7 + $0x1] sm:$0x1]
    %v643 = vld [vmem:[%s4] sm:$0xf]
    %v644 = vld [vmem:[%s4 + $0x4] sm:$0xf]
    %v645 = vld [vmem:[%s4 + $0x8] sm:$0xf]
    %v646 = vld [vmem:[%s4 + $0xc] sm:$0xf]
    %v647 = vld [vmem:[%s4 + $0x10] sm:$0xf]
    %v648 = vld [vmem:[%s4 + $0x14] sm:$0xf]
    %v649 = vld [vmem:[%s4 + $0x18] sm:$0xf]
    %v650 = vld [vmem:[%s4 + $0x1c] sm:$0xf]
    %v651 = vld [vmem:[%s4 + $0x20] sm:$0xf]
    %v652 = vld [vmem:[%s4 + $0x24] sm:$0xf]
    %v653 = vld [vmem:[%s4 + $0x28] sm:$0xf]
    %v654 = vld [vmem:[%s4 + $0x2c] sm:$0xf]
    %v655 = vld [vmem:[%s4 + $0x30] sm:$0xf]
    %v656 = vld [vmem:[%s4 + $0x34] sm:$0xf]
    %v657 = vld [vmem:[%s4 + $0x38] sm:$0xf]
    %v658 = vld [vmem:[%s4 + $0x3c] sm:$0xf]
    %v659 = vlaneseq
    %v660 = vshrl.u32 %v659, 7
    %v661 = vsub.s32 0, %v660
    %v662 = vrot.slane %v642, %v661
    %v679 = vunpack.c.l.b16 %v643
    %v680 = vunpack.c.l.b16 %v644
    %v681 = vunpack.c.l.b16 %v645
    %v682 = vunpack.c.l.b16 %v646
    %v683 = vunpack.c.l.b16 %v647
    %v684 = vunpack.c.l.b16 %v648
    %v685 = vunpack.c.l.b16 %v649
    %v686 = vunpack.c.l.b16 %v650
    %v687 = vunpack.c.l.b16 %v651
    %v688 = vunpack.c.l.b16 %v652
    %v689 = vunpack.c.l.b16 %v653
    %v690 = vunpack.c.l.b16 %v654
    %v691 = vunpack.c.l.b16 %v655
    %v692 = vunpack.c.l.b16 %v656
    %v693 = vunpack.c.l.b16 %v657
    %v694 = vunpack.c.l.b16 %v658
    %v695 = vpack.c.b16 %v680, %v679
    %v696 = vpack.c.b16 %v682, %v681
    %v697 = vpack.c.b16 %v684, %v683
    %v698 = vpack.c.b16 %v686, %v685
    %v699 = vpack.c.b16 %v688, %v687
    %v700 = vpack.c.b16 %v690, %v689
    %v701 = vpack.c.b16 %v692, %v691
    %v702 = vpack.c.b16 %v694, %v693
    %711 = vmatprep.subr.bf16.mxu0 0
    %712 = vmatpush1.bf16.msra.mxu0 %v702
    %713 = vmatprep.subr.bf16.mxu0 0
    %714 = vmatpush1.bf16.msra.mxu0 %v701
    %715 = vmatprep.subr.bf16.mxu0 0
    %716 = vmatpush1.bf16.msra.mxu0 %v700
    %717 = vmatprep.subr.bf16.mxu0 0
    %718 = vmatpush1.bf16.msra.mxu0 %v699
    %719 = vmatprep.subr.bf16.mxu0 0
    %720 = vmatpush1.bf16.msra.mxu0 %v698
    %721 = vmatprep.subr.bf16.mxu0 0
    %722 = vmatpush1.bf16.msra.mxu0 %v697
    %723 = vmatprep.subr.bf16.mxu0 0
    %724 = vmatpush1.bf16.msra.mxu0 %v696
    %725 = vmatprep.subr.bf16.mxu0 0
    %726 = vmatpush1.bf16.msra.mxu0 %v695
    %727 = vmatprep.subr.bf16.mxu0 0
    %728 = vmatpush2.bf16.msra.mxu0 0
    %729 = vmatprep.subr.bf16.mxu0 0
    %730 = vmatpush2.bf16.msra.mxu0 0
    %731 = vmatprep.subr.bf16.mxu0 0
    %732 = vmatpush2.bf16.msra.mxu0 0
    %733 = vmatprep.subr.bf16.mxu0 0
    %734 = vmatpush2.bf16.msra.mxu0 0
    %735 = vmatprep.subr.bf16.mxu0 0
    %736 = vmatpush2.bf16.msra.mxu0 0
    %737 = vmatprep.subr.bf16.mxu0 0
    %738 = vmatpush2.bf16.msra.mxu0 0
    %739 = vmatprep.subr.bf16.mxu0 0
    %740 = vmatpush2.bf16.msra.mxu0 0
    %741 = vmatprep.subr.bf16.mxu0 0
    %742 = vmatpush2.bf16.msra.mxu0 0
    %743 = vmatprep.mubr.bf16.mxu0 0
    %744 = vmatmul.mubr.bf16.gmra.mxu0 %v634
    %v745 = vpop.f32.mrf.mxu0
    %v746 = vadd.f32 %v662, %v745
    %v747 = vpop.f32.mrf.mxu0
    %v748 = vpop.f32.mrf.mxu0
    %v749 = vadd.f32 %v662, %v748
    %v750 = vpop.f32.mrf.mxu0
    %751 = vmatprep.mubr.bf16.mxu0 0
    %752 = vmatmul.mubr.bf16.gmra.mxu0 %v635
    %v753 = vpop.f32.mrf.mxu0
    %v754 = vadd.f32 %v662, %v753
    %v755 = vpop.f32.mrf.mxu0
    %v756 = vpop.f32.mrf.mxu0
    %v757 = vadd.f32 %v662, %v756
    %v758 = vpop.f32.mrf.mxu0
    %759 = vmatprep.mubr.bf16.mxu0 0
    %760 = vmatmul.mubr.bf16.gmra.mxu0 %v636
    %v761 = vpop.f32.mrf.mxu0
    %v762 = vadd.f32 %v662, %v761
    %v763 = vpop.f32.mrf.mxu0
    %v764 = vpop.f32.mrf.mxu0
    %v765 = vadd.f32 %v662, %v764
    %v766 = vpop.f32.mrf.mxu0
    %767 = vmatprep.mubr.bf16.mxu0 0
    %768 = vmatmul.mubr.bf16.gmra.mxu0 %v637
    %v769 = vpop.f32.mrf.mxu0
    %v770 = vadd.f32 %v662, %v769
    %v771 = vpop.f32.mrf.mxu0
    %v772 = vpop.f32.mrf.mxu0
    %v773 = vadd.f32 %v662, %v772
    %v774 = vpop.f32.mrf.mxu0
    %775 = vmatprep.mubr.bf16.mxu0 0
    %776 = vmatmul.mubr.bf16.gmra.mxu0 %v638
    %v777 = vpop.f32.mrf.mxu0
    %v778 = vadd.f32 %v662, %v777
    %v779 = vpop.f32.mrf.mxu0
    %v780 = vpop.f32.mrf.mxu0
    %v781 = vadd.f32 %v662, %v780
    %v782 = vpop.f32.mrf.mxu0
    %783 = vmatprep.mubr.bf16.mxu0 0
    %784 = vmatmul.mubr.bf16.gmra.mxu0 %v639
    %v785 = vpop.f32.mrf.mxu0
    %v786 = vadd.f32 %v662, %v785
    %v787 = vpop.f32.mrf.mxu0
    %v788 = vpop.f32.mrf.mxu0
    %v789 = vadd.f32 %v662, %v788
    %v790 = vpop.f32.mrf.mxu0
    %791 = vmatprep.mubr.bf16.mxu0 0
    %792 = vmatmul.mubr.bf16.gmra.mxu0 %v640
    %v793 = vpop.f32.mrf.mxu0
    %v794 = vadd.f32 %v662, %v793
    %v795 = vpop.f32.mrf.mxu0
    %v796 = vpop.f32.mrf.mxu0
    %v797 = vadd.f32 %v662, %v796
    %v798 = vpop.f32.mrf.mxu0
    %799 = vmatprep.mubr.bf16.mxu0 0
    %800 = vmatmul.mubr.bf16.gmra.mxu0 %v641
    %v801 = vpop.f32.mrf.mxu0
    %v802 = vadd.f32 %v662, %v801
    %v803 = vpop.f32.mrf.mxu0
    %v804 = vpop.f32.mrf.mxu0
    %v805 = vadd.f32 %v662, %v804
    %v806 = vpop.f32.mrf.mxu0
    %807 = vdwg.mxu0
    %v808 = vmax.f32 %v746, 0.0
    %v809 = vmax.f32 %v749, 0.0
    %v810 = vmax.f32 %v754, 0.0
    %v811 = vmax.f32 %v757, 0.0
    %v812 = vmax.f32 %v762, 0.0
    %v813 = vmax.f32 %v765, 0.0
    %v814 = vmax.f32 %v770, 0.0
    %v815 = vmax.f32 %v773, 0.0
    %v816 = vmax.f32 %v778, 0.0
    %v817 = vmax.f32 %v781, 0.0
    %v818 = vmax.f32 %v786, 0.0
    %v819 = vmax.f32 %v789, 0.0
    %v820 = vmax.f32 %v794, 0.0
    %v821 = vmax.f32 %v797, 0.0
    %v822 = vmax.f32 %v802, 0.0
    %v823 = vmax.f32 %v805, 0.0
    %v824 = vpack.c.bf16 %v809, %v808
    %v825 = vpack.c.bf16 %v811, %v810
    %v826 = vpack.c.bf16 %v813, %v812
    %v827 = vpack.c.bf16 %v815, %v814
    %v828 = vpack.c.bf16 %v817, %v816
    %v829 = vpack.c.bf16 %v819, %v818
    %v830 = vpack.c.bf16 %v821, %v820
    %v831 = vpack.c.bf16 %v823, %v822
    %v832 = vld [vmem:[%s7 + $0x2] sm:$0x1]
    %v833 = vld [vmem:[%s5] sm:$0xf]
    %v834 = vld [vmem:[%s5 + $0x4] sm:$0xf]
    %v835 = vld [vmem:[%s5 + $0x8] sm:$0xf]
    %v836 = vld [vmem:[%s5 + $0xc] sm:$0xf]
    %v837 = vld [vmem:[%s5 + $0x10] sm:$0xf]
    %v838 = vld [vmem:[%s5 + $0x14] sm:$0xf]
    %v839 = vld [vmem:[%s5 + $0x18] sm:$0xf]
    %v840 = vld [vmem:[%s5 + $0x1c] sm:$0xf]
    %v841 = vlaneseq
    %v842 = vshrl.u32 %v841, 7
    %v843 = vsub.s32 0, %v842
    %v844 = vrot.slane %v832, %v843
    %v853 = vunpack.c.l.b16 %v833
    %v854 = vunpack.c.l.b16 %v834
    %v855 = vunpack.c.l.b16 %v835
    %v856 = vunpack.c.l.b16 %v836
    %v857 = vunpack.c.l.b16 %v837
    %v858 = vunpack.c.l.b16 %v838
    %v859 = vunpack.c.l.b16 %v839
    %v860 = vunpack.c.l.b16 %v840
    %v861 = vpack.c.b16 %v854, %v853
    %v862 = vpack.c.b16 %v856, %v855
    %v863 = vpack.c.b16 %v858, %v857
    %v864 = vpack.c.b16 %v860, %v859
    %vm869 = vcmask 523264
    %v871 = vsel %vm869, %v824, 0
    %v874 = vsel %vm869, %v825, 0
    %v877 = vsel %vm869, %v826, 0
    %v880 = vsel %vm869, %v827, 0
    %v883 = vsel %vm869, %v828, 0
    %v886 = vsel %vm869, %v829, 0
    %v889 = vsel %vm869, %v830, 0
    %v892 = vsel %vm869, %v831, 0
    %894 = vmatprep.subr.bf16.mxu0 0
    %895 = vmatpush1.bf16.msra.mxu0 0
    %896 = vmatprep.subr.bf16.mxu0 0
    %897 = vmatpush1.bf16.msra.mxu0 0
    %898 = vmatprep.subr.bf16.mxu0 0
    %899 = vmatpush1.bf16.msra.mxu0 0
    %900 = vmatprep.subr.bf16.mxu0 0
    %901 = vmatpush1.bf16.msra.mxu0 0
    %902 = vmatprep.subr.bf16.mxu0 0
    %903 = vmatpush1.bf16.msra.mxu0 %v864
    %904 = vmatprep.subr.bf16.mxu0 0
    %905 = vmatpush1.bf16.msra.mxu0 %v863
    %906 = vmatprep.subr.bf16.mxu0 0
    %907 = vmatpush1.bf16.msra.mxu0 %v862
    %908 = vmatprep.subr.bf16.mxu0 0
    %909 = vmatpush1.bf16.msra.mxu0 %v861
    %910 = vmatprep.subr.bf16.mxu0 0
    %911 = vmatpush2.bf16.msra.mxu0 0
    %912 = vmatprep.subr.bf16.mxu0 0
    %913 = vmatpush2.bf16.msra.mxu0 0
    %914 = vmatprep.subr.bf16.mxu0 0
    %915 = vmatpush2.bf16.msra.mxu0 0
    %916 = vmatprep.subr.bf16.mxu0 0
    %917 = vmatpush2.bf16.msra.mxu0 0
    %918 = vmatprep.subr.bf16.mxu0 0
    %919 = vmatpush2.bf16.msra.mxu0 0
    %920 = vmatprep.subr.bf16.mxu0 0
    %921 = vmatpush2.bf16.msra.mxu0 0
    %922 = vmatprep.subr.bf16.mxu0 0
    %923 = vmatpush2.bf16.msra.mxu0 0
    %924 = vmatprep.subr.bf16.mxu0 0
    %925 = vmatpush2.bf16.msra.mxu0 0
    %926 = vmatprep.mubr.bf16.mxu0 0
    %927 = vmatmul.mubr.bf16.gmra.mxu0 %v871
    %v928 = vpop.f32.mrf.mxu0
    %v929 = vadd.f32 %v844, %v928
    %v930 = vpop.f32.mrf.mxu0
    %v931 = vpop.f32.mrf.mxu0
    %v932 = vadd.f32 %v844, %v931
    %v933 = vpop.f32.mrf.mxu0
    %934 = vmatprep.mubr.bf16.mxu0 0
    %935 = vmatmul.mubr.bf16.gmra.mxu0 %v874
    %v936 = vpop.f32.mrf.mxu0
    %v937 = vadd.f32 %v844, %v936
    %v938 = vpop.f32.mrf.mxu0
    %v939 = vpop.f32.mrf.mxu0
    %v940 = vadd.f32 %v844, %v939
    %v941 = vpop.f32.mrf.mxu0
    %942 = vmatprep.mubr.bf16.mxu0 0
    %943 = vmatmul.mubr.bf16.gmra.mxu0 %v877
    %v944 = vpop.f32.mrf.mxu0
    %v945 = vadd.f32 %v844, %v944
    %v946 = vpop.f32.mrf.mxu0
    %v947 = vpop.f32.mrf.mxu0
    %v948 = vadd.f32 %v844, %v947
    %v949 = vpop.f32.mrf.mxu0
    %950 = vmatprep.mubr.bf16.mxu0 0
    %951 = vmatmul.mubr.bf16.gmra.mxu0 %v880
    %v952 = vpop.f32.mrf.mxu0
    %v953 = vadd.f32 %v844, %v952
    %v954 = vpop.f32.mrf.mxu0
    %v955 = vpop.f32.mrf.mxu0
    %v956 = vadd.f32 %v844, %v955
    %v957 = vpop.f32.mrf.mxu0
    %958 = vmatprep.mubr.bf16.mxu0 0
    %959 = vmatmul.mubr.bf16.gmra.mxu0 %v883
    %v960 = vpop.f32.mrf.mxu0
    %v961 = vadd.f32 %v844, %v960
    %v962 = vpop.f32.mrf.mxu0
    %v963 = vpop.f32.mrf.mxu0
    %v964 = vadd.f32 %v844, %v963
    %v965 = vpop.f32.mrf.mxu0
    %966 = vmatprep.mubr.bf16.mxu0 0
    %967 = vmatmul.mubr.bf16.gmra.mxu0 %v886
    %v968 = vpop.f32.mrf.mxu0
    %v969 = vadd.f32 %v844, %v968
    %v970 = vpop.f32.mrf.mxu0
    %v971 = vpop.f32.mrf.mxu0
    %v972 = vadd.f32 %v844, %v971
    %v973 = vpop.f32.mrf.mxu0
    %974 = vmatprep.mubr.bf16.mxu0 0
    %975 = vmatmul.mubr.bf16.gmra.mxu0 %v889
    %v976 = vpop.f32.mrf.mxu0
    %v977 = vadd.f32 %v844, %v976
    %v978 = vpop.f32.mrf.mxu0
    %v979 = vpop.f32.mrf.mxu0
    %v980 = vadd.f32 %v844, %v979
    %v981 = vpop.f32.mrf.mxu0
    %982 = vmatprep.mubr.bf16.mxu0 0
    %983 = vmatmul.mubr.bf16.gmra.mxu0 %v892
    %v984 = vpop.f32.mrf.mxu0
    %v985 = vadd.f32 %v844, %v984
    %v986 = vpop.f32.mrf.mxu0
    %v987 = vpop.f32.mrf.mxu0
    %v988 = vadd.f32 %v844, %v987
    %v989 = vpop.f32.mrf.mxu0
    %990 = vdwg.mxu0
    %v991 = vmax.f32 %v929, 0.0
    %v992 = vmax.f32 %v932, 0.0
    %v993 = vmax.f32 %v937, 0.0
    %v994 = vmax.f32 %v940, 0.0
    %v995 = vmax.f32 %v945, 0.0
    %v996 = vmax.f32 %v948, 0.0
    %v997 = vmax.f32 %v953, 0.0
    %v998 = vmax.f32 %v956, 0.0
    %v999 = vmax.f32 %v961, 0.0
    %v1000 = vmax.f32 %v964, 0.0
    %v1001 = vmax.f32 %v969, 0.0
    %v1002 = vmax.f32 %v972, 0.0
    %v1003 = vmax.f32 %v977, 0.0
    %v1004 = vmax.f32 %v980, 0.0
    %v1005 = vmax.f32 %v985, 0.0
    %v1006 = vmax.f32 %v988, 0.0
    %v1007 = vpack.c.bf16 %v992, %v991
    %v1008 = vpack.c.bf16 %v994, %v993
    %v1009 = vpack.c.bf16 %v996, %v995
    %v1010 = vpack.c.bf16 %v998, %v997
    %v1011 = vpack.c.bf16 %v1000, %v999
    %v1012 = vpack.c.bf16 %v1002, %v1001
    %v1013 = vpack.c.bf16 %v1004, %v1003
    %v1014 = vpack.c.bf16 %v1006, %v1005
    %v1015 = vld [vmem:[%s7 + $0x3] sm:$0x1]
    %v1016 = vld [vmem:[%s6] sm:$0xf]
    %v1017 = vld [vmem:[%s6 + $0x4] sm:$0xf]
    %v1018 = vld [vmem:[%s6 + $0x8] sm:$0xf]
    %v1019 = vld [vmem:[%s6 + $0xc] sm:$0xf]
    %v1020 = vlaneseq
    %v1021 = vshrl.u32 %v1020, 7
    %v1022 = vsub.s32 0, %v1021
    %v1023 = vrot.slane %v1015, %v1022
    %v1028 = vunpack.c.l.b16 %v1016
    %v1029 = vunpack.c.l.b16 %v1017
    %v1030 = vunpack.c.l.b16 %v1018
    %v1031 = vunpack.c.l.b16 %v1019
    %v1032 = vpack.c.b16 %v1029, %v1028
    %v1033 = vpack.c.b16 %v1031, %v1030
    %vm1036 = vcmask 261120
    %v1038 = vsel %vm1036, %v1007, 0
    %v1041 = vsel %vm1036, %v1008, 0
    %v1044 = vsel %vm1036, %v1009, 0
    %v1047 = vsel %vm1036, %v1010, 0
    %v1050 = vsel %vm1036, %v1011, 0
    %v1053 = vsel %vm1036, %v1012, 0
    %v1056 = vsel %vm1036, %v1013, 0
    %v1059 = vsel %vm1036, %v1014, 0
    %1061 = vmatprep.subr.bf16.mxu0 0
    %1062 = vmatpush1.bf16.msra.mxu0 0
    %1063 = vmatprep.subr.bf16.mxu0 0
    %1064 = vmatpush1.bf16.msra.mxu0 0
    %1065 = vmatprep.subr.bf16.mxu0 0
    %1066 = vmatpush1.bf16.msra.mxu0 0
    %1067 = vmatprep.subr.bf16.mxu0 0
    %1068 = vmatpush1.bf16.msra.mxu0 0
    %1069 = vmatprep.subr.bf16.mxu0 0
    %1070 = vmatpush1.bf16.msra.mxu0 0
    %1071 = vmatprep.subr.bf16.mxu0 0
    %1072 = vmatpush1.bf16.msra.mxu0 0
    %1073 = vmatprep.subr.bf16.mxu0 0
    %1074 = vmatpush1.bf16.msra.mxu0 %v1033
    %1075 = vmatprep.subr.bf16.mxu0 0
    %1076 = vmatpush1.bf16.msra.mxu0 %v1032
    %1077 = vmatprep.subr.bf16.mxu0 0
    %1078 = vmatpush2.bf16.msra.mxu0 0
    %1079 = vmatprep.subr.bf16.mxu0 0
    %1080 = vmatpush2.bf16.msra.mxu0 0
    %1081 = vmatprep.subr.bf16.mxu0 0
    %1082 = vmatpush2.bf16.msra.mxu0 0
    %1083 = vmatprep.subr.bf16.mxu0 0
    %1084 = vmatpush2.bf16.msra.mxu0 0
    %1085 = vmatprep.subr.bf16.mxu0 0
    %1086 = vmatpush2.bf16.msra.mxu0 0
    %1087 = vmatprep.subr.bf16.mxu0 0
    %1088 = vmatpush2.bf16.msra.mxu0 0
    %1089 = vmatprep.subr.bf16.mxu0 0
    %1090 = vmatpush2.bf16.msra.mxu0 0
    %1091 = vmatprep.subr.bf16.mxu0 0
    %1092 = vmatpush2.bf16.msra.mxu0 0
    %1093 = vmatprep.mubr.bf16.mxu0 0
    %1094 = vmatmul.mubr.bf16.gmra.mxu0 %v1038
    %v1095 = vpop.f32.mrf.mxu0
    %v1096 = vadd.f32 %v1023, %v1095
    %v1097 = vpop.f32.mrf.mxu0
    %v1098 = vpop.f32.mrf.mxu0
    %v1099 = vadd.f32 %v1023, %v1098
    %v1100 = vpop.f32.mrf.mxu0
    %1101 = vmatprep.mubr.bf16.mxu0 0
    %1102 = vmatmul.mubr.bf16.gmra.mxu0 %v1041
    %v1103 = vpop.f32.mrf.mxu0
    %v1104 = vadd.f32 %v1023, %v1103
    %v1105 = vpop.f32.mrf.mxu0
    %v1106 = vpop.f32.mrf.mxu0
    %v1107 = vadd.f32 %v1023, %v1106
    %v1108 = vpop.f32.mrf.mxu0
    %1109 = vmatprep.mubr.bf16.mxu0 0
    %1110 = vmatmul.mubr.bf16.gmra.mxu0 %v1044
    %v1111 = vpop.f32.mrf.mxu0
    %v1112 = vadd.f32 %v1023, %v1111
    %v1113 = vpop.f32.mrf.mxu0
    %v1114 = vpop.f32.mrf.mxu0
    %v1115 = vadd.f32 %v1023, %v1114
    %v1116 = vpop.f32.mrf.mxu0
    %1117 = vmatprep.mubr.bf16.mxu0 0
    %1118 = vmatmul.mubr.bf16.gmra.mxu0 %v1047
    %v1119 = vpop.f32.mrf.mxu0
    %v1120 = vadd.f32 %v1023, %v1119
    %v1121 = vpop.f32.mrf.mxu0
    %v1122 = vpop.f32.mrf.mxu0
    %v1123 = vadd.f32 %v1023, %v1122
    %v1124 = vpop.f32.mrf.mxu0
    %1125 = vmatprep.mubr.bf16.mxu0 0
    %1126 = vmatmul.mubr.bf16.gmra.mxu0 %v1050
    %v1127 = vpop.f32.mrf.mxu0
    %v1128 = vadd.f32 %v1023, %v1127
    %v1129 = vpop.f32.mrf.mxu0
    %v1130 = vpop.f32.mrf.mxu0
    %v1131 = vadd.f32 %v1023, %v1130
    %v1132 = vpop.f32.mrf.mxu0
    %1133 = vmatprep.mubr.bf16.mxu0 0
    %1134 = vmatmul.mubr.bf16.gmra.mxu0 %v1053
    %v1135 = vpop.f32.mrf.mxu0
    %v1136 = vadd.f32 %v1023, %v1135
    %v1137 = vpop.f32.mrf.mxu0
    %v1138 = vpop.f32.mrf.mxu0
    %v1139 = vadd.f32 %v1023, %v1138
    %v1140 = vpop.f32.mrf.mxu0
    %1141 = vmatprep.mubr.bf16.mxu0 0
    %1142 = vmatmul.mubr.bf16.gmra.mxu0 %v1056
    %v1143 = vpop.f32.mrf.mxu0
    %v1144 = vadd.f32 %v1023, %v1143
    %v1145 = vpop.f32.mrf.mxu0
    %v1146 = vpop.f32.mrf.mxu0
    %v1147 = vadd.f32 %v1023, %v1146
    %v1148 = vpop.f32.mrf.mxu0
    %1149 = vmatprep.mubr.bf16.mxu0 0
    %1150 = vmatmul.mubr.bf16.gmra.mxu0 %v1059
    %v1151 = vpop.f32.mrf.mxu0
    %v1152 = vadd.f32 %v1023, %v1151
    %v1153 = vpop.f32.mrf.mxu0
    %v1154 = vpop.f32.mrf.mxu0
    %v1155 = vadd.f32 %v1023, %v1154
    %v1156 = vpop.f32.mrf.mxu0
    %1157 = vdwg.mxu0
    %v1158 = vmax.f32 %v1096, 0.0
    %v1159 = vmax.f32 %v1099, 0.0
    %v1160 = vmax.f32 %v1104, 0.0
    %v1161 = vmax.f32 %v1107, 0.0
    %v1162 = vmax.f32 %v1112, 0.0
    %v1163 = vmax.f32 %v1115, 0.0
    %v1164 = vmax.f32 %v1120, 0.0
    %v1165 = vmax.f32 %v1123, 0.0
    %v1166 = vmax.f32 %v1128, 0.0
    %v1167 = vmax.f32 %v1131, 0.0
    %v1168 = vmax.f32 %v1136, 0.0
    %v1169 = vmax.f32 %v1139, 0.0
    %v1170 = vmax.f32 %v1144, 0.0
    %v1171 = vmax.f32 %v1147, 0.0
    %v1172 = vmax.f32 %v1152, 0.0
    %v1173 = vmax.f32 %v1155, 0.0
    %v1174 = vld [vmem:[%s7 + $0x4] sm:$0x1]
    %v1175 = vlaneseq
    %v1176 = vshrl.u32 %v1175, 7
    %v1177 = vsub.s32 0, %v1176
    %v1178 = vrot.slane %v1174, %v1177
    %v1179 = vmul.f32 %v1158, %v1178
    %v1180 = vmul.f32 %v1159, %v1178
    %v1181 = vmul.f32 %v1160, %v1178
    %v1182 = vmul.f32 %v1161, %v1178
    %v1183 = vmul.f32 %v1162, %v1178
    %v1184 = vmul.f32 %v1163, %v1178
    %v1185 = vmul.f32 %v1164, %v1178
    %v1186 = vmul.f32 %v1165, %v1178
    %v1187 = vmul.f32 %v1166, %v1178
    %v1188 = vmul.f32 %v1167, %v1178
    %v1189 = vmul.f32 %v1168, %v1178
    %v1190 = vmul.f32 %v1169, %v1178
    %v1191 = vmul.f32 %v1170, %v1178
    %v1192 = vmul.f32 %v1171, %v1178
    %v1193 = vmul.f32 %v1172, %v1178
    %v1194 = vmul.f32 %v1173, %v1178
    %vm1195 = vcmask 130048
    %v1196 = vsel %vm1195, %v1179, 0.0
    %1197 = vadd.xlane.f32.xlu0 %v1196
    %v1198 = vpop.xlane.xlu0 %1197
    %v1199 = vsel %vm1195, %v1180, 0.0
    %1200 = vadd.xlane.f32.xlu0 %v1199
    %v1201 = vpop.xlane.xlu0 %1200
    %v1202 = vsel %vm1195, %v1181, 0.0
    %1203 = vadd.xlane.f32.xlu0 %v1202
    %v1204 = vpop.xlane.xlu0 %1203
    %v1205 = vsel %vm1195, %v1182, 0.0
    %1206 = vadd.xlane.f32.xlu0 %v1205
    %v1207 = vpop.xlane.xlu0 %1206
    %v1208 = vsel %vm1195, %v1183, 0.0
    %1209 = vadd.xlane.f32.xlu0 %v1208
    %v1210 = vpop.xlane.xlu0 %1209
    %v1211 = vsel %vm1195, %v1184, 0.0
    %1212 = vadd.xlane.f32.xlu0 %v1211
    %v1213 = vpop.xlane.xlu0 %1212
    %v1214 = vsel %vm1195, %v1185, 0.0
    %1215 = vadd.xlane.f32.xlu0 %v1214
    %v1216 = vpop.xlane.xlu0 %1215
    %v1217 = vsel %vm1195, %v1186, 0.0
    %1218 = vadd.xlane.f32.xlu0 %v1217
    %v1219 = vpop.xlane.xlu0 %1218
    %v1220 = vsel %vm1195, %v1187, 0.0
    %1221 = vadd.xlane.f32.xlu0 %v1220
    %v1222 = vpop.xlane.xlu0 %1221
    %v1223 = vsel %vm1195, %v1188, 0.0
    %1224 = vadd.xlane.f32.xlu0 %v1223
    %v1225 = vpop.xlane.xlu0 %1224
    %v1226 = vsel %vm1195, %v1189, 0.0
    %1227 = vadd.xlane.f32.xlu0 %v1226
    %v1228 = vpop.xlane.xlu0 %1227
    %v1229 = vsel %vm1195, %v1190, 0.0
    %1230 = vadd.xlane.f32.xlu0 %v1229
    %v1231 = vpop.xlane.xlu0 %1230
    %v1232 = vsel %vm1195, %v1191, 0.0
    %1233 = vadd.xlane.f32.xlu0 %v1232
    %v1234 = vpop.xlane.xlu0 %1233
    %v1235 = vsel %vm1195, %v1192, 0.0
    %1236 = vadd.xlane.f32.xlu0 %v1235
    %v1237 = vpop.xlane.xlu0 %1236
    %v1238 = vsel %vm1195, %v1193, 0.0
    %1239 = vadd.xlane.f32.xlu0 %v1238
    %v1240 = vpop.xlane.xlu0 %1239
    %v1241 = vsel %vm1195, %v1194, 0.0
    %1242 = vadd.xlane.f32.xlu0 %v1241
    %v1243 = vpop.xlane.xlu0 %1242
    %v1244 = vadd.f32 %v148, %v1198
    %v1245 = vadd.f32 %v150, %v1201
    %v1246 = vadd.f32 %v152, %v1204
    %v1247 = vadd.f32 %v154, %v1207
    %v1248 = vadd.f32 %v156, %v1210
    %v1249 = vadd.f32 %v158, %v1213
    %v1250 = vadd.f32 %v160, %v1216
    %v1251 = vadd.f32 %v162, %v1219
    %v1252 = vadd.f32 %v164, %v1222
    %v1253 = vadd.f32 %v166, %v1225
    %v1254 = vadd.f32 %v168, %v1228
    %v1255 = vadd.f32 %v170, %v1231
    %v1256 = vadd.f32 %v172, %v1234
    %v1257 = vadd.f32 %v174, %v1237
    %v1258 = vadd.f32 %v176, %v1240
    %v1259 = vadd.f32 %v178, %v1243
    %s1260 = sld [smem:[#allocation2]]
    %v1261 = vstv %s1260
    %v1262 = vadd.f32 %v1244, %v1261
    %v1263 = vadd.f32 %v1245, %v1261
    %v1264 = vadd.f32 %v1246, %v1261
    %v1265 = vadd.f32 %v1247, %v1261
    %v1266 = vadd.f32 %v1248, %v1261
    %v1267 = vadd.f32 %v1249, %v1261
    %v1268 = vadd.f32 %v1250, %v1261
    %v1269 = vadd.f32 %v1251, %v1261
    %v1270 = vadd.f32 %v1252, %v1261
    %v1271 = vadd.f32 %v1253, %v1261
    %v1272 = vadd.f32 %v1254, %v1261
    %v1273 = vadd.f32 %v1255, %v1261
    %v1274 = vadd.f32 %v1256, %v1261
    %v1275 = vadd.f32 %v1257, %v1261
    %v1276 = vadd.f32 %v1258, %v1261
    %v1277 = vadd.f32 %v1259, %v1261
    %v1278 = vxor.u32 %v1262, 2147483648
    %v1279 = vxor.u32 %v1263, 2147483648
    %v1280 = vxor.u32 %v1264, 2147483648
    %v1281 = vxor.u32 %v1265, 2147483648
    %v1282 = vxor.u32 %v1266, 2147483648
    %v1283 = vxor.u32 %v1267, 2147483648
    %v1284 = vxor.u32 %v1268, 2147483648
    %v1285 = vxor.u32 %v1269, 2147483648
    %v1286 = vxor.u32 %v1270, 2147483648
    %v1287 = vxor.u32 %v1271, 2147483648
    %v1288 = vxor.u32 %v1272, 2147483648
    %v1289 = vxor.u32 %v1273, 2147483648
    %v1290 = vxor.u32 %v1274, 2147483648
    %v1291 = vxor.u32 %v1275, 2147483648
    %v1292 = vxor.u32 %v1276, 2147483648
    %v1293 = vxor.u32 %v1277, 2147483648
    %v1294 = vmul.f32 %v1278, 1.442695
    %v1295 = vpow.pop %v1294
    %v1296 = vmul.f32 %v1279, 1.442695
    %v1297 = vpow.pop %v1296
    %v1298 = vmul.f32 %v1280, 1.442695
    %v1299 = vpow.pop %v1298
    %v1300 = vmul.f32 %v1281, 1.442695
    %v1301 = vpow.pop %v1300
    %v1302 = vmul.f32 %v1282, 1.442695
    %v1303 = vpow.pop %v1302
    %v1304 = vmul.f32 %v1283, 1.442695
    %v1305 = vpow.pop %v1304
    %v1306 = vmul.f32 %v1284, 1.442695
    %v1307 = vpow.pop %v1306
    %v1308 = vmul.f32 %v1285, 1.442695
    %v1309 = vpow.pop %v1308
    %v1310 = vmul.f32 %v1286, 1.442695
    %v1311 = vpow.pop %v1310
    %v1312 = vmul.f32 %v1287, 1.442695
    %v1313 = vpow.pop %v1312
    %v1314 = vmul.f32 %v1288, 1.442695
    %v1315 = vpow.pop %v1314
    %v1316 = vmul.f32 %v1289, 1.442695
    %v1317 = vpow.pop %v1316
    %v1318 = vmul.f32 %v1290, 1.442695
    %v1319 = vpow.pop %v1318
    %v1320 = vmul.f32 %v1291, 1.442695
    %v1321 = vpow.pop %v1320
    %v1322 = vmul.f32 %v1292, 1.442695
    %v1323 = vpow.pop %v1322
    %v1324 = vmul.f32 %v1293, 1.442695
    %v1325 = vpow.pop %v1324
    %v1326 = vadd.f32 %v1295, 1.0
    %v1327 = vadd.f32 %v1297, 1.0
    %v1328 = vadd.f32 %v1299, 1.0
    %v1329 = vadd.f32 %v1301, 1.0
    %v1330 = vadd.f32 %v1303, 1.0
    %v1331 = vadd.f32 %v1305, 1.0
    %v1332 = vadd.f32 %v1307, 1.0
    %v1333 = vadd.f32 %v1309, 1.0
    %v1334 = vadd.f32 %v1311, 1.0
    %v1335 = vadd.f32 %v1313, 1.0
    %v1336 = vadd.f32 %v1315, 1.0
    %v1337 = vadd.f32 %v1317, 1.0
    %v1338 = vadd.f32 %v1319, 1.0
    %v1339 = vadd.f32 %v1321, 1.0
    %v1340 = vadd.f32 %v1323, 1.0
    %v1341 = vadd.f32 %v1325, 1.0
    %v1342 = vrcp.pop %v1326
    %v1343 = vmul.f32 1.0, %v1342
    %v1344 = vrcp.pop %v1327
    %v1345 = vmul.f32 1.0, %v1344
    %v1346 = vrcp.pop %v1328
    %v1347 = vmul.f32 1.0, %v1346
    %v1348 = vrcp.pop %v1329
    %v1349 = vmul.f32 1.0, %v1348
    %v1350 = vrcp.pop %v1330
    %v1351 = vmul.f32 1.0, %v1350
    %v1352 = vrcp.pop %v1331
    %v1353 = vmul.f32 1.0, %v1352
    %v1354 = vrcp.pop %v1332
    %v1355 = vmul.f32 1.0, %v1354
    %v1356 = vrcp.pop %v1333
    %v1357 = vmul.f32 1.0, %v1356
    %v1358 = vrcp.pop %v1334
    %v1359 = vmul.f32 1.0, %v1358
    %v1360 = vrcp.pop %v1335
    %v1361 = vmul.f32 1.0, %v1360
    %v1362 = vrcp.pop %v1336
    %v1363 = vmul.f32 1.0, %v1362
    %v1364 = vrcp.pop %v1337
    %v1365 = vmul.f32 1.0, %v1364
    %v1366 = vrcp.pop %v1338
    %v1367 = vmul.f32 1.0, %v1366
    %v1368 = vrcp.pop %v1339
    %v1369 = vmul.f32 1.0, %v1368
    %v1370 = vrcp.pop %v1340
    %v1371 = vmul.f32 1.0, %v1370
    %v1372 = vrcp.pop %v1341
    %v1373 = vmul.f32 1.0, %v1372
    %s1374 = sld [smem:[#allocation2 + $0x1]]
    %v1375 = vstv %s1374
    %v1376 = vmul.f32 %v1343, %v1375
    %v1377 = vmul.f32 %v1345, %v1375
    %v1378 = vmul.f32 %v1347, %v1375
    %v1379 = vmul.f32 %v1349, %v1375
    %v1380 = vmul.f32 %v1351, %v1375
    %v1381 = vmul.f32 %v1353, %v1375
    %v1382 = vmul.f32 %v1355, %v1375
    %v1383 = vmul.f32 %v1357, %v1375
    %v1384 = vmul.f32 %v1359, %v1375
    %v1385 = vmul.f32 %v1361, %v1375
    %v1386 = vmul.f32 %v1363, %v1375
    %v1387 = vmul.f32 %v1365, %v1375
    %v1388 = vmul.f32 %v1367, %v1375
    %v1389 = vmul.f32 %v1369, %v1375
    %v1390 = vmul.f32 %v1371, %v1375
    %v1391 = vmul.f32 %v1373, %v1375
    %s1392 = sld [smem:[#allocation2 + $0x2]]
    %v1393 = vstv %s1392
    %v1394 = vadd.f32 %v1376, %v1393
    %v1395 = vadd.f32 %v1377, %v1393
    %v1396 = vadd.f32 %v1378, %v1393
    %v1397 = vadd.f32 %v1379, %v1393
    %v1398 = vadd.f32 %v1380, %v1393
    %v1399 = vadd.f32 %v1381, %v1393
    %v1400 = vadd.f32 %v1382, %v1393
    %v1401 = vadd.f32 %v1383, %v1393
    %v1402 = vadd.f32 %v1384, %v1393
    %v1403 = vadd.f32 %v1385, %v1393
    %v1404 = vadd.f32 %v1386, %v1393
    %v1405 = vadd.f32 %v1387, %v1393
    %v1406 = vadd.f32 %v1388, %v1393
    %v1407 = vadd.f32 %v1389, %v1393
    %v1408 = vadd.f32 %v1390, %v1393
    %v1409 = vadd.f32 %v1391, %v1393
    %v1426 = vlaneseq
    %v1427 = vand.u32 %v1426, 127
    %v1428 = vlaneseq
    %v1429 = vshrl.u32 %v1428, 7
    %v1430 = vsub.s32 %v1427, %v1429
    %v1431 = vrot.slane %v1394, %v1430
    %v1432 = vadd.s32 %v1427, 4294967288
    %v1433 = vlaneseq
    %v1434 = vshrl.u32 %v1433, 7
    %v1435 = vsub.s32 %v1432, %v1434
    %v1436 = vrot.slane %v1395, %v1435
    %vm1437 = vcmask 130112
    %v1438 = vsel %vm1437, %v1436, %v1431
    %v1439 = vadd.s32 %v1427, 4294967280
    %v1440 = vlaneseq
    %v1441 = vshrl.u32 %v1440, 7
    %v1442 = vsub.s32 %v1439, %v1441
    %v1443 = vrot.slane %v1396, %v1442
    %vm1444 = vcmask 195712
    %v1445 = vsel %vm1444, %v1443, %v1438
    %v1446 = vadd.s32 %v1427, 4294967272
    %v1447 = vlaneseq
    %v1448 = vshrl.u32 %v1447, 7
    %v1449 = vsub.s32 %v1446, %v1448
    %v1450 = vrot.slane %v1397, %v1449
    %vm1451 = vcmask 261312
    %v1452 = vsel %vm1451, %v1450, %v1445
    %v1453 = vadd.s32 %v1427, 4294967264
    %v1454 = vlaneseq
    %v1455 = vshrl.u32 %v1454, 7
    %v1456 = vsub.s32 %v1453, %v1455
    %v1457 = vrot.slane %v1398, %v1456
    %vm1458 = vcmask 326912
    %v1459 = vsel %vm1458, %v1457, %v1452
    %v1460 = vadd.s32 %v1427, 4294967256
    %v1461 = vlaneseq
    %v1462 = vshrl.u32 %v1461, 7
    %v1463 = vsub.s32 %v1460, %v1462
    %v1464 = vrot.slane %v1399, %v1463
    %vm1465 = vcmask 392512
    %v1466 = vsel %vm1465, %v1464, %v1459
    %v1467 = vadd.s32 %v1427, 4294967248
    %v1468 = vlaneseq
    %v1469 = vshrl.u32 %v1468, 7
    %v1470 = vsub.s32 %v1467, %v1469
    %v1471 = vrot.slane %v1400, %v1470
    %vm1472 = vcmask 458112
    %v1473 = vsel %vm1472, %v1471, %v1466
    %v1474 = vadd.s32 %v1427, 4294967240
    %v1475 = vlaneseq
    %v1476 = vshrl.u32 %v1475, 7
    %v1477 = vsub.s32 %v1474, %v1476
    %v1478 = vrot.slane %v1401, %v1477
    %vm1479 = vcmask 523712
    %v1480 = vsel %vm1479, %v1478, %v1473
    %v1481 = vadd.s32 %v1427, 4294967232
    %v1482 = vlaneseq
    %v1483 = vshrl.u32 %v1482, 7
    %v1484 = vsub.s32 %v1481, %v1483
    %v1485 = vrot.slane %v1402, %v1484
    %vm1486 = vcmask 589312
    %v1487 = vsel %vm1486, %v1485, %v1480
    %v1488 = vadd.s32 %v1427, 4294967224
    %v1489 = vlaneseq
    %v1490 = vshrl.u32 %v1489, 7
    %v1491 = vsub.s32 %v1488, %v1490
    %v1492 = vrot.slane %v1403, %v1491
    %vm1493 = vcmask 654912
    %v1494 = vsel %vm1493, %v1492, %v1487
    %v1495 = vadd.s32 %v1427, 4294967216
    %v1496 = vlaneseq
    %v1497 = vshrl.u32 %v1496, 7
    %v1498 = vsub.s32 %v1495, %v1497
    %v1499 = vrot.slane %v1404, %v1498
    %vm1500 = vcmask 720512
    %v1501 = vsel %vm1500, %v1499, %v1494
    %v1502 = vadd.s32 %v1427, 4294967208
    %v1503 = vlaneseq
    %v1504 = vshrl.u32 %v1503, 7
    %v1505 = vsub.s32 %v1502, %v1504
    %v1506 = vrot.slane %v1405, %v1505
    %vm1507 = vcmask 786112
    %v1508 = vsel %vm1507, %v1506, %v1501
    %v1509 = vadd.s32 %v1427, 4294967200
    %v1510 = vlaneseq
    %v1511 = vshrl.u32 %v1510, 7
    %v1512 = vsub.s32 %v1509, %v1511
    %v1513 = vrot.slane %v1406, %v1512
    %vm1514 = vcmask 851712
    %v1515 = vsel %vm1514, %v1513, %v1508
    %v1516 = vadd.s32 %v1427, 4294967192
    %v1517 = vlaneseq
    %v1518 = vshrl.u32 %v1517, 7
    %v1519 = vsub.s32 %v1516, %v1518
    %v1520 = vrot.slane %v1407, %v1519
    %vm1521 = vcmask 917312
    %v1522 = vsel %vm1521, %v1520, %v1515
    %v1523 = vadd.s32 %v1427, 4294967184
    %v1524 = vlaneseq
    %v1525 = vshrl.u32 %v1524, 7
    %v1526 = vsub.s32 %v1523, %v1525
    %v1527 = vrot.slane %v1408, %v1526
    %vm1528 = vcmask 982912
    %v1529 = vsel %vm1528, %v1527, %v1522
    %v1530 = vadd.s32 %v1427, 4294967176
    %v1531 = vlaneseq
    %v1532 = vshrl.u32 %v1531, 7
    %v1533 = vsub.s32 %v1530, %v1532
    %v1534 = vrot.slane %v1409, %v1533
    %vm1535 = vcmask 1048512
    %v1536 = vsel %vm1535, %v1534, %v1529
    %1538 = vst [vmem:[%s9] sm:$0x1] %v1536
    // Predicated region
    $region42: #{ncf_forward.1} parent=1 // pred_check
      _
    $region43: #{ncf_forward.1} parent=1 // pred_check_branch
      %1540 = sbr.rel (0) target = $region45
    $region44: #{ncf_forward.1} parent=1 // pred_region
      _
    $region45: #{ncf_forward.1} parent=1 // pred_fallthru
      _
    // Predicated region
    $region46: #{ncf_forward.1} parent=1 // pred_check
      _
    $region47: #{ncf_forward.1} parent=1 // pred_check_branch
      %1542 = sbr.rel (0) target = $region49
    $region48: #{ncf_forward.1} parent=1 // pred_region
      _
    $region49: #{ncf_forward.1} parent=1 // pred_fallthru
      _
    %1543 = vsyncpa [#allocation3], 1

</llo_original>
